<compile_context>
chip_gen: v6e
topology: v6e:2x2x1
jax: 0.10.0
libtpu: 0.0.40
codegen_flags: <defaults>
</compile_context>

<pallas_src>
import functools

import jax
import jax.numpy as jnp
from jax.experimental import pallas as pl
from jax.experimental.pallas import tpu as pltpu

# ----- small config consistent with the module ---------------------------------
BATCH      = 8
INPUT_DIM  = 32
HIDDEN_DIM = 64
NUM_LAYERS = 2
NUM_LABELS = 2
DTYPE      = jnp.float32

LANE   = 128       # TPU lane width; pad feature dims to this for dense vregs
MAX_TB = 1024      # batch tile cap; ~1 MiB/tile of f32 activations, tiny vs VMEM


def _round_up(n, m):
    return ((n + m - 1) // m) * m


def _gelu_exact(x):
    # nn.GELU() default: 0.5 * x * (1 + erf(x / sqrt(2)))
    return 0.5 * x * (1.0 + jax.lax.erf(x / jnp.sqrt(2.0).astype(x.dtype)))


def mlp_kernel(x_ref, w_in_ref, b_in_ref, w_h_ref, b_h_ref, w_out_ref, b_out_ref,
               out_ref, *, num_layers):
    dot = functools.partial(jnp.dot, preferred_element_type=jnp.float32,
                            precision=jax.lax.Precision.HIGHEST)

    # input layer + GELU (f32 accumulation, true-f32 MXU passes)
    h = dot(x_ref[...], w_in_ref[...]) + b_in_ref[...]
    h = _gelu_exact(h)

    # hidden layers — statically unrolled (num_layers is small); dropout is
    # identity at inference.
    for i in range(num_layers):
        h = dot(h, w_h_ref[i]) + b_h_ref[i]
        h = _gelu_exact(h)

    # output layer: matmul stays 128-lane dense (padded W_out cols are zero),
    # only the store is narrow -> no 64x write amplification to HBM.
    logits = dot(h, w_out_ref[...]) + b_out_ref[...]
    num_labels = out_ref.shape[-1]
    out_ref[...] = logits[:, :num_labels].astype(out_ref.dtype)


def prepare_params(w_in, b_in, w_h, b_h, w_out, b_out):
    """Zero-pad feature dims to full 128 lanes ONCE (numerically exact:
    GELU(0)=0 and zero weight rows/cols contribute nothing). Call at init,
    NOT per forward."""
    hidden_dim = w_in.shape[1]
    num_labels = w_out.shape[1]
    hpad = _round_up(hidden_dim, LANE)
    opad = _round_up(num_labels, LANE)
    dh = hpad - hidden_dim
    do = opad - num_labels

    w_in_p  = jnp.pad(w_in,  ((0, 0), (0, dh)))
    b_in_p  = jnp.pad(b_in,  ((0, 0), (0, dh)))
    w_h_p   = jnp.pad(w_h,   ((0, 0), (0, dh), (0, dh)))
    b_h_p   = jnp.pad(b_h,   ((0, 0), (0, 0), (0, dh)))
    w_out_p = jnp.pad(w_out, ((0, dh), (0, do)))
    b_out_p = jnp.pad(b_out, ((0, 0), (0, do)))
    return w_in_p, b_in_p, w_h_p, b_h_p, w_out_p, b_out_p, num_labels


def _choose_tb(batch):
    # Aim for >= 2 batch tiles (v7x: 2 TensorCores) while keeping tiles
    # sublane-aligned and capped at MAX_TB to amortize per-step grid overhead.
    half = _round_up(max(1, pl.cdiv(batch, 2)), 8)
    return max(8, min(MAX_TB, half))


def linear_classifier_forward(x, w_in_p, b_in_p, w_h_p, b_h_p, w_out_p, b_out_p,
                              num_labels):
    """x: [B, input_dim], pre-padded params -> logits: [B, num_labels]."""
    batch, input_dim = x.shape
    hpad = w_in_p.shape[1]
    opad = w_out_p.shape[1]
    num_layers = w_h_p.shape[0]

    tb = _choose_tb(batch)
    grid = (pl.cdiv(batch, tb),)   # ragged last block handled by Pallas masking

    kernel = functools.partial(mlp_kernel, num_layers=num_layers)
    const2 = lambda i: (0, 0)
    const3 = lambda i: (0, 0, 0)

    return pl.pallas_call(
        kernel,
        out_shape=jax.ShapeDtypeStruct((batch, num_labels), x.dtype),
        grid=grid,
        in_specs=[
            pl.BlockSpec((tb, input_dim), lambda i: (i, 0)),          # x tile
            pl.BlockSpec((input_dim, hpad), const2),                  # W_in  (resident)
            pl.BlockSpec((1, hpad), const2),                          # b_in  (resident)
            pl.BlockSpec((num_layers, hpad, hpad), const3),           # W_h   (resident)
            pl.BlockSpec((num_layers, 1, hpad), const3),              # b_h   (resident)
            pl.BlockSpec((hpad, opad), const2),                       # W_out (resident)
            pl.BlockSpec((1, opad), const2),                          # b_out (resident)
        ],
        out_specs=pl.BlockSpec((tb, num_labels), lambda i: (i, 0)),   # unpadded logits
        compiler_params=pltpu.CompilerParams(
            dimension_semantics=("parallel",),  # v7x: shard batch tiles over 2 TCs
        ),
    )(x, w_in_p, b_in_p, w_h_p, b_h_p, w_out_p, b_out_p)


def init_params(key):
    ks = jax.random.split(key, 6)
    scale = 0.05
    w_in  = scale * jax.random.normal(ks[0], (INPUT_DIM, HIDDEN_DIM), DTYPE)
    b_in  = scale * jax.random.normal(ks[1], (1, HIDDEN_DIM), DTYPE)
    w_h   = scale * jax.random.normal(ks[2], (NUM_LAYERS, HIDDEN_DIM, HIDDEN_DIM), DTYPE)
    b_h   = scale * jax.random.normal(ks[3], (NUM_LAYERS, 1, HIDDEN_DIM), DTYPE)
    w_out = scale * jax.random.normal(ks[4], (HIDDEN_DIM, NUM_LABELS), DTYPE)
    b_out = scale * jax.random.normal(ks[5], (1, NUM_LABELS), DTYPE)
    return w_in, b_in, w_h, b_h, w_out, b_out


def reference_forward(x, w_in, b_in, w_h, b_h, w_out, b_out):
    dot = functools.partial(jnp.dot, precision=jax.lax.Precision.HIGHEST)

    def gelu(v):
        return 0.5 * v * (1.0 + jax.lax.erf(v / jnp.sqrt(2.0)))

    h = gelu(dot(x, w_in) + b_in)
    for i in range(w_h.shape[0]):
        h = gelu(dot(h, w_h[i]) + b_h[i])
    return dot(h, w_out) + b_out


if __name__ == "__main__":
    key = jax.random.PRNGKey(0)
    k_x, k_p = jax.random.split(key)
    x = jax.random.normal(k_x, (BATCH, INPUT_DIM), DTYPE)
    params = init_params(k_p)

    # Padding hoisted out of the forward hot path: do it once here.
    padded = prepare_params(*params)

    forward = jax.jit(linear_classifier_forward, static_argnums=(7,))
    logits = forward(x, *padded)
    jax.block_until_ready(logits)

    ref = reference_forward(x, *params)
    assert logits.shape == (BATCH, NUM_LABELS)
    assert jnp.allclose(logits, ref, atol=1e-5, rtol=1e-5), "mismatch vs reference"

    print("KERNEL_OK")
</pallas_src>

<mosaic_0001>
module attributes {stable_mosaic.version = 11 : i64} {
  func.func @mlp_kernel(%arg0: i32, %arg1: memref<8x32xf32, #tpu.memory_space<vmem>>, %arg2: memref<32x128xf32, #tpu.memory_space<vmem>>, %arg3: memref<1x128xf32, #tpu.memory_space<vmem>>, %arg4: memref<2x128x128xf32, #tpu.memory_space<vmem>>, %arg5: memref<2x1x128xf32, #tpu.memory_space<vmem>>, %arg6: memref<128x128xf32, #tpu.memory_space<vmem>>, %arg7: memref<1x128xf32, #tpu.memory_space<vmem>>, %arg8: memref<8x2xf32, #tpu.memory_space<vmem>>) attributes {dimension_semantics = [#tpu.dimension_semantics<parallel>], iteration_bounds = array<i64: 1>, scalar_prefetch = 0 : i64, scratch_operands = 0 : i64, tpu.core_type = #tpu.core_type<tc>, window_params = [{transform_indices = @transform_0, window_bounds = array<i64: 8, 32>}, {pipeline_mode = #tpu.pipeline_mode<synchronous>, transform_indices = @transform_1, window_bounds = array<i64: 32, 128>}, {pipeline_mode = #tpu.pipeline_mode<synchronous>, transform_indices = @transform_2, window_bounds = array<i64: 1, 128>}, {pipeline_mode = #tpu.pipeline_mode<synchronous>, transform_indices = @transform_3, window_bounds = array<i64: 2, 128, 128>}, {pipeline_mode = #tpu.pipeline_mode<synchronous>, transform_indices = @transform_4, window_bounds = array<i64: 2, 1, 128>}, {pipeline_mode = #tpu.pipeline_mode<synchronous>, transform_indices = @transform_5, window_bounds = array<i64: 128, 128>}, {pipeline_mode = #tpu.pipeline_mode<synchronous>, transform_indices = @transform_6, window_bounds = array<i64: 1, 128>}, {transform_indices = @transform_7, window_bounds = array<i64: 8, 2>}]} {
    %c0 = arith.constant 0 : index
    %c0_0 = arith.constant 0 : index
    %0 = vector.load %arg1[%c0, %c0_0] : memref<8x32xf32, #tpu.memory_space<vmem>>, vector<8x32xf32>
    %c0_1 = arith.constant 0 : index
    %c0_2 = arith.constant 0 : index
    %1 = vector.load %arg2[%c0_1, %c0_2] : memref<32x128xf32, #tpu.memory_space<vmem>>, vector<32x128xf32>
    %cst = arith.constant dense<0.000000e+00> : vector<8x128xf32>
    %2 = tpu.matmul %0, %1, %cst {dimension_numbers = #tpu.dot_dimension_numbers<[1], [0], [0], [1], [0, 0, 1, 1], [], []>, precision = #tpu.contract_precision<fp32>} : vector<8x32xf32>, vector<32x128xf32>, vector<8x128xf32> -> vector<8x128xf32>
    %c0_3 = arith.constant 0 : index
    %c0_4 = arith.constant 0 : index
    %3 = vector.load %arg3[%c0_3, %c0_4] : memref<1x128xf32, #tpu.memory_space<vmem>>, vector<1x128xf32>
    %4 = vector.broadcast %3 : vector<1x128xf32> to vector<8x128xf32>
    %5 = arith.addf %2, %4 : vector<8x128xf32>
    %cst_5 = arith.constant 5.000000e-01 : f32
    %6 = vector.broadcast %cst_5 : f32 to vector<8x128xf32>
    %7 = arith.mulf %6, %5 : vector<8x128xf32>
    %cst_6 = arith.constant 2.000000e+00 : f32
    %8 = math.sqrt %cst_6 : f32
    %9 = vector.broadcast %8 : f32 to vector<8x128xf32>
    %10 = arith.divf %5, %9 : vector<8x128xf32>
    %11 = math.erf %10 : vector<8x128xf32>
    %cst_7 = arith.constant 1.000000e+00 : f32
    %12 = vector.broadcast %cst_7 : f32 to vector<8x128xf32>
    %13 = arith.addf %12, %11 : vector<8x128xf32>
    %14 = arith.mulf %7, %13 : vector<8x128xf32>
    %c0_8 = arith.constant 0 : index
    %c0_9 = arith.constant 0 : index
    %c0_10 = arith.constant 0 : index
    %15 = vector.load %arg4[%c0_8, %c0_9, %c0_10] : memref<2x128x128xf32, #tpu.memory_space<vmem>>, vector<1x128x128xf32>
    %16 = vector.shape_cast %15 : vector<1x128x128xf32> to vector<128x128xf32>
    %cst_11 = arith.constant dense<0.000000e+00> : vector<8x128xf32>
    %17 = tpu.matmul %14, %16, %cst_11 {dimension_numbers = #tpu.dot_dimension_numbers<[1], [0], [0], [1], [0, 0, 1, 1], [], []>, precision = #tpu.contract_precision<fp32>} : vector<8x128xf32>, vector<128x128xf32>, vector<8x128xf32> -> vector<8x128xf32>
    %c0_12 = arith.constant 0 : index
    %c0_13 = arith.constant 0 : index
    %c0_14 = arith.constant 0 : index
    %18 = vector.load %arg5[%c0_12, %c0_13, %c0_14] : memref<2x1x128xf32, #tpu.memory_space<vmem>>, vector<1x1x128xf32>
    %19 = vector.shape_cast %18 : vector<1x1x128xf32> to vector<1x128xf32>
    %20 = vector.broadcast %19 : vector<1x128xf32> to vector<8x128xf32>
    %21 = arith.addf %17, %20 : vector<8x128xf32>
    %cst_15 = arith.constant 5.000000e-01 : f32
    %22 = vector.broadcast %cst_15 : f32 to vector<8x128xf32>
    %23 = arith.mulf %22, %21 : vector<8x128xf32>
    %cst_16 = arith.constant 2.000000e+00 : f32
    %24 = math.sqrt %cst_16 : f32
    %25 = vector.broadcast %24 : f32 to vector<8x128xf32>
    %26 = arith.divf %21, %25 : vector<8x128xf32>
    %27 = math.erf %26 : vector<8x128xf32>
    %cst_17 = arith.constant 1.000000e+00 : f32
    %28 = vector.broadcast %cst_17 : f32 to vector<8x128xf32>
    %29 = arith.addf %28, %27 : vector<8x128xf32>
    %30 = arith.mulf %23, %29 : vector<8x128xf32>
    %c1 = arith.constant 1 : index
    %c0_18 = arith.constant 0 : index
    %c0_19 = arith.constant 0 : index
    %31 = vector.load %arg4[%c1, %c0_18, %c0_19] : memref<2x128x128xf32, #tpu.memory_space<vmem>>, vector<1x128x128xf32>
    %32 = vector.shape_cast %31 : vector<1x128x128xf32> to vector<128x128xf32>
    %cst_20 = arith.constant dense<0.000000e+00> : vector<8x128xf32>
    %33 = tpu.matmul %30, %32, %cst_20 {dimension_numbers = #tpu.dot_dimension_numbers<[1], [0], [0], [1], [0, 0, 1, 1], [], []>, precision = #tpu.contract_precision<fp32>} : vector<8x128xf32>, vector<128x128xf32>, vector<8x128xf32> -> vector<8x128xf32>
    %c1_21 = arith.constant 1 : index
    %c0_22 = arith.constant 0 : index
    %c0_23 = arith.constant 0 : index
    %34 = vector.load %arg5[%c1_21, %c0_22, %c0_23] : memref<2x1x128xf32, #tpu.memory_space<vmem>>, vector<1x1x128xf32>
    %35 = vector.shape_cast %34 : vector<1x1x128xf32> to vector<1x128xf32>
    %36 = vector.broadcast %35 : vector<1x128xf32> to vector<8x128xf32>
    %37 = arith.addf %33, %36 : vector<8x128xf32>
    %cst_24 = arith.constant 5.000000e-01 : f32
    %38 = vector.broadcast %cst_24 : f32 to vector<8x128xf32>
    %39 = arith.mulf %38, %37 : vector<8x128xf32>
    %cst_25 = arith.constant 2.000000e+00 : f32
    %40 = math.sqrt %cst_25 : f32
    %41 = vector.broadcast %40 : f32 to vector<8x128xf32>
    %42 = arith.divf %37, %41 : vector<8x128xf32>
    %43 = math.erf %42 : vector<8x128xf32>
    %cst_26 = arith.constant 1.000000e+00 : f32
    %44 = vector.broadcast %cst_26 : f32 to vector<8x128xf32>
    %45 = arith.addf %44, %43 : vector<8x128xf32>
    %46 = arith.mulf %39, %45 : vector<8x128xf32>
    %c0_27 = arith.constant 0 : index
    %c0_28 = arith.constant 0 : index
    %47 = vector.load %arg6[%c0_27, %c0_28] : memref<128x128xf32, #tpu.memory_space<vmem>>, vector<128x128xf32>
    %cst_29 = arith.constant dense<0.000000e+00> : vector<8x128xf32>
    %48 = tpu.matmul %46, %47, %cst_29 {dimension_numbers = #tpu.dot_dimension_numbers<[1], [0], [0], [1], [0, 0, 1, 1], [], []>, precision = #tpu.contract_precision<fp32>} : vector<8x128xf32>, vector<128x128xf32>, vector<8x128xf32> -> vector<8x128xf32>
    %c0_30 = arith.constant 0 : index
    %c0_31 = arith.constant 0 : index
    %49 = vector.load %arg7[%c0_30, %c0_31] : memref<1x128xf32, #tpu.memory_space<vmem>>, vector<1x128xf32>
    %50 = vector.broadcast %49 : vector<1x128xf32> to vector<8x128xf32>
    %51 = arith.addf %48, %50 : vector<8x128xf32>
    %52 = vector.extract_strided_slice %51 {offsets = [0, 0], sizes = [8, 2], strides = [1, 1]} : vector<8x128xf32> to vector<8x2xf32>
    %c0_32 = arith.constant 0 : index
    %c0_33 = arith.constant 0 : index
    %53 = vector.load %arg8[%c0_32, %c0_33] : memref<8x2xf32, #tpu.memory_space<vmem>>, vector<8x2xf32>
    tpu.vector_store %arg8[%c0_32, %c0_33], %52 {strides = array<i32>} : memref<8x2xf32, #tpu.memory_space<vmem>>, vector<8x2xf32>,
    return
  }
  func.func @transform_0(%arg0: i32) -> (i32, i32) {
    %c0_i32 = arith.constant 0 : i32
    %c0_i32_0 = arith.constant 0 : i32
    return %arg0, %c0_i32 : i32, i32
  }
  func.func @transform_1(%arg0: i32) -> (i32, i32) {
    %c0_i32 = arith.constant 0 : i32
    %c0_i32_0 = arith.constant 0 : i32
    %c0_i32_1 = arith.constant 0 : i32
    return %c0_i32, %c0_i32_0 : i32, i32
  }
  func.func @transform_2(%arg0: i32) -> (i32, i32) {
    %c0_i32 = arith.constant 0 : i32
    %c0_i32_0 = arith.constant 0 : i32
    %c0_i32_1 = arith.constant 0 : i32
    return %c0_i32, %c0_i32_0 : i32, i32
  }
  func.func @transform_3(%arg0: i32) -> (i32, i32, i32) {
    %c0_i32 = arith.constant 0 : i32
    %c0_i32_0 = arith.constant 0 : i32
    %c0_i32_1 = arith.constant 0 : i32
    %c0_i32_2 = arith.constant 0 : i32
    return %c0_i32, %c0_i32_0, %c0_i32_1 : i32, i32, i32
  }
  func.func @transform_4(%arg0: i32) -> (i32, i32, i32) {
    %c0_i32 = arith.constant 0 : i32
    %c0_i32_0 = arith.constant 0 : i32
    %c0_i32_1 = arith.constant 0 : i32
    %c0_i32_2 = arith.constant 0 : i32
    return %c0_i32, %c0_i32_0, %c0_i32_1 : i32, i32, i32
  }
  func.func @transform_5(%arg0: i32) -> (i32, i32) {
    %c0_i32 = arith.constant 0 : i32
    %c0_i32_0 = arith.constant 0 : i32
    %c0_i32_1 = arith.constant 0 : i32
    return %c0_i32, %c0_i32_0 : i32, i32
  }
  func.func @transform_6(%arg0: i32) -> (i32, i32) {
    %c0_i32 = arith.constant 0 : i32
    %c0_i32_0 = arith.constant 0 : i32
    %c0_i32_1 = arith.constant 0 : i32
    return %c0_i32, %c0_i32_0 : i32, i32
  }
  func.func @transform_7(%arg0: i32) -> (i32, i32) {
    %c0_i32 = arith.constant 0 : i32
    %c0_i32_0 = arith.constant 0 : i32
    return %arg0, %c0_i32 : i32, i32
  }
}

</mosaic_0001>

<llo_original>
// kernel: linear_classifier_forward.1
$region0: #{linear_classifier_forward.1}
  #allocation0 [shape = 'u32[]', space=smem, size = 0x4, offset = 0x4, fixed_abs, tag = 'smem constant byte address 0x4 - core index']
  #allocation1 [shape = 'u32[144,128]{1,0:T(1,128)}', space=vmem, size = 0x12000, scoped, tag = 'internal scratch']
  %s0 = inlined_call_operand.hbm [shape: f32[8,32], index: 0, kind: input, shape index: {}]
  %s1 = inlined_call_operand.hbm [shape: f32[32,128], index: 1, kind: input, shape index: {}]
  %s2 = inlined_call_operand.vmem [shape: f32[1,128], index: 2, kind: input, shape index: {}]
  %s3 = inlined_call_operand.hbm [shape: f32[2,128,128], index: 3, kind: input, shape index: {}]
  %s4 = inlined_call_operand.vmem [shape: f32[2,1,128], index: 4, kind: input, shape index: {}]
  %s5 = inlined_call_operand.hbm [shape: f32[128,128], index: 5, kind: input, shape index: {}]
  %s6 = inlined_call_operand.vmem [shape: f32[1,128], index: 6, kind: input, shape index: {}]
  %s7 = inlined_call_operand.vmem [shape: f32[8,2], index: 7, kind: output, shape index: {}]
  %s8 = sld [smem:[#allocation0]]
  $region54: #{linear_classifier_forward.1} parent=0
    _
  %s10 = ssub.s32 1, %s8
  %s11 = scalar_select 0, %s10, %s8
  $region1: #{linear_classifier_forward.1} parent=0
    #allocation2 [shape = 'u8[4096]{0}', space=vmem, size = 0x1000, scoped, tag = 'input window, operand 0, single buffered']
    #allocation3 [shape = 's32[1]{0}', space=sflag, size = 0x4, scoped, tag = 'scoped memory for linear_classifier_forward.1']
    #allocation4 [shape = 'u8[16384]{0}', space=vmem, size = 0x4000, scoped, tag = 'input window, operand 1, single buffered']
    #allocation5 [shape = 's32[1]{0}', space=sflag, size = 0x4, scoped, tag = 'scoped memory for linear_classifier_forward.1']
    #allocation6 [shape = 'u8[131072]{0}', space=vmem, size = 0x20000, scoped, tag = 'input window, operand 3, single buffered']
    #allocation7 [shape = 'u8[65536]{0}', space=vmem, size = 0x10000, scoped, tag = 'input window, operand 5, single buffered']
    #allocation8 [shape = 's32[1]{0}', space=sflag, size = 0x4, scoped, tag = 'scoped memory for linear_classifier_forward.1']
    %12 = vsyncpa [#allocation3], 0
    %13 = vsyncpa [#allocation5], 0
    %14 = vsyncpa [#allocation8], 0
    // Predicated region
    $region2: #{linear_classifier_forward.1} parent=1 // pred_check
      _
    $region3: #{linear_classifier_forward.1} parent=1 // pred_check_branch
      %16 = sbr.rel (0) target = $region5
    $region4: #{linear_classifier_forward.1} parent=1 // pred_region
      %s18 = ssub.s32 128, 128
      %19 = vsyncadd [#allocation3], %s18
      %s21 = sshll.u32 [#allocation2], 4
      %s22 = int_to_ptr.vmem [resolvable:$true] %s21
      %24 = dma.hbm_to_vmem [thread:$0]  %s0, 128, %s22, [#allocation3]
    $region5: #{linear_classifier_forward.1} parent=1 // pred_fallthru
      _
    // Predicated region
    $region6: #{linear_classifier_forward.1} parent=1 // pred_check
      _
    $region7: #{linear_classifier_forward.1} parent=1 // pred_check_branch
      %26 = sbr.rel (0) target = $region9
    $region8: #{linear_classifier_forward.1} parent=1 // pred_region
      %s28 = ssub.s32 512, 512
      %29 = vsyncadd [#allocation5], %s28
      %s30 = sshll.u32 [#allocation4], 4
      %s31 = int_to_ptr.vmem [resolvable:$true] %s30
      %36 = dma.hbm_to_vmem [thread:$0]  %s1, 512, %s31, [#allocation5], 128, 128, 8
    $region9: #{linear_classifier_forward.1} parent=1 // pred_fallthru
      _
    // Predicated region
    $region10: #{linear_classifier_forward.1} parent=1 // pred_check
      _
    $region11: #{linear_classifier_forward.1} parent=1 // pred_check_branch
      %38 = sbr.rel (0) target = $region13
    $region12: #{linear_classifier_forward.1} parent=1 // pred_region
      _
    $region13: #{linear_classifier_forward.1} parent=1 // pred_fallthru
      _
    // Predicated region
    $region14: #{linear_classifier_forward.1} parent=1 // pred_check
      _
    $region15: #{linear_classifier_forward.1} parent=1 // pred_check_branch
      %40 = sbr.rel (0) target = $region17
    $region16: #{linear_classifier_forward.1} parent=1 // pred_region
      %s42 = ssub.s32 4096, 4096
      %43 = vsyncadd [#allocation5], %s42
      %s44 = sshll.u32 [#allocation6], 4
      %s45 = int_to_ptr.vmem [resolvable:$true] %s44
      %50 = dma.hbm_to_vmem [thread:$0]  %s3, 4096, %s45, [#allocation5], 128, 128, 8
    $region17: #{linear_classifier_forward.1} parent=1 // pred_fallthru
      _
    // Predicated region
    $region18: #{linear_classifier_forward.1} parent=1 // pred_check
      _
    $region19: #{linear_classifier_forward.1} parent=1 // pred_check_branch
      %52 = sbr.rel (0) target = $region21
    $region20: #{linear_classifier_forward.1} parent=1 // pred_region
      _
    $region21: #{linear_classifier_forward.1} parent=1 // pred_fallthru
      _
    // Predicated region
    $region22: #{linear_classifier_forward.1} parent=1 // pred_check
      _
    $region23: #{linear_classifier_forward.1} parent=1 // pred_check_branch
      %54 = sbr.rel (0) target = $region25
    $region24: #{linear_classifier_forward.1} parent=1 // pred_region
      %s56 = ssub.s32 2048, 2048
      %57 = vsyncadd [#allocation8], %s56
      %s58 = sshll.u32 [#allocation7], 4
      %s59 = int_to_ptr.vmem [resolvable:$true] %s58
      %64 = dma.hbm_to_vmem [thread:$0]  %s5, 2048, %s59, [#allocation8], 128, 128, 8
    $region25: #{linear_classifier_forward.1} parent=1 // pred_fallthru
      _
    // Predicated region
    $region26: #{linear_classifier_forward.1} parent=1 // pred_check
      _
    $region27: #{linear_classifier_forward.1} parent=1 // pred_check_branch
      %66 = sbr.rel (0) target = $region29
    $region28: #{linear_classifier_forward.1} parent=1 // pred_region
      _
    $region29: #{linear_classifier_forward.1} parent=1 // pred_fallthru
      _
    // Predicated region
    $region30: #{linear_classifier_forward.1} parent=1 // pred_check
      _
    $region31: #{linear_classifier_forward.1} parent=1 // pred_check_branch
      %68 = sbr.rel (0) target = $region33
    $region32: #{linear_classifier_forward.1} parent=1 // pred_region
      %69 = dma.done [#allocation3], 128
    $region33: #{linear_classifier_forward.1} parent=1 // pred_fallthru
      _
    // Predicated region
    $region34: #{linear_classifier_forward.1} parent=1 // pred_check
      _
    $region35: #{linear_classifier_forward.1} parent=1 // pred_check_branch
      %71 = sbr.rel (0) target = $region37
    $region36: #{linear_classifier_forward.1} parent=1 // pred_region
      %72 = dma.done [#allocation5], 512
    $region37: #{linear_classifier_forward.1} parent=1 // pred_fallthru
      _
    // Predicated region
    $region38: #{linear_classifier_forward.1} parent=1 // pred_check
      _
    $region39: #{linear_classifier_forward.1} parent=1 // pred_check_branch
      %74 = sbr.rel (0) target = $region41
    $region40: #{linear_classifier_forward.1} parent=1 // pred_region
      %75 = dma.done [#allocation5], 4096
    $region41: #{linear_classifier_forward.1} parent=1 // pred_fallthru
      _
    // Predicated region
    $region42: #{linear_classifier_forward.1} parent=1 // pred_check
      _
    $region43: #{linear_classifier_forward.1} parent=1 // pred_check_branch
      %77 = sbr.rel (0) target = $region45
    $region44: #{linear_classifier_forward.1} parent=1 // pred_region
      %78 = dma.done [#allocation8], 2048
    $region45: #{linear_classifier_forward.1} parent=1 // pred_fallthru
      _
    %v79 = vld [vmem:[#allocation2] sm:$0xff]
    %v80 = vld [vmem:[#allocation4] sm:$0xff]
    %v81 = vld [vmem:[#allocation4 + $0x8] sm:$0xff]
    %v82 = vld [vmem:[#allocation4 + $0x10] sm:$0xff]
    %v83 = vld [vmem:[#allocation4 + $0x18] sm:$0xff]
    %v84 = vld [vmem:[%s2] sm:$0x1]
    %v86 = vlaneseq
    %v87 = vshrl.u32 %v86, 7
    %v88 = vsub.s32 0, %v87
    %v89 = vrot.slane %v84, %v88
    %vm91 = vcmask 261120
    %v93 = vsel %vm91, %v79, 0
    %95 = vmatprep.subr.mxu0 0.0
    %96 = vmatpush1.msra.mxu0 0.0
    %97 = vmatprep.subr.mxu0 0.0
    %98 = vmatpush1.msra.mxu0 0.0
    %99 = vmatprep.subr.mxu0 0.0
    %100 = vmatpush1.msra.mxu0 0.0
    %101 = vmatprep.subr.mxu0 0.0
    %102 = vmatpush1.msra.mxu0 0.0
    %103 = vmatprep.subr.mxu0 0.0
    %104 = vmatpush1.msra.mxu0 0.0
    %105 = vmatprep.subr.mxu0 0.0
    %106 = vmatpush1.msra.mxu0 0.0
    %107 = vmatprep.subr.mxu0 0.0
    %108 = vmatpush1.msra.mxu0 0.0
    %109 = vmatprep.subr.mxu0 0.0
    %110 = vmatpush1.msra.mxu0 0.0
    %111 = vmatprep.subr.mxu0 0.0
    %112 = vmatpush1.msra.mxu0 0.0
    %113 = vmatprep.subr.mxu0 0.0
    %114 = vmatpush1.msra.mxu0 0.0
    %115 = vmatprep.subr.mxu0 0.0
    %116 = vmatpush1.msra.mxu0 0.0
    %117 = vmatprep.subr.mxu0 0.0
    %118 = vmatpush1.msra.mxu0 0.0
    %119 = vmatprep.subr.mxu0 0.0
    %v120 = vand.u32 %v83, 4294901760
    %121 = vmatpush1.msra.mxu0 %v120
    %122 = vmatprep.subr.mxu0 0.0
    %v123 = vand.u32 %v82, 4294901760
    %124 = vmatpush1.msra.mxu0 %v123
    %125 = vmatprep.subr.mxu0 0.0
    %v126 = vand.u32 %v81, 4294901760
    %127 = vmatpush1.msra.mxu0 %v126
    %128 = vmatprep.subr.mxu0 0.0
    %v129 = vand.u32 %v80, 4294901760
    %130 = vmatpush1.msra.mxu0 %v129
    %131 = vmatprep.subr.mxu0 0.0
    %132 = vmatpush2.msra.mxu0 0.0
    %133 = vmatprep.subr.mxu0 0.0
    %134 = vmatpush2.msra.mxu0 0.0
    %135 = vmatprep.subr.mxu0 0.0
    %136 = vmatpush2.msra.mxu0 0.0
    %137 = vmatprep.subr.mxu0 0.0
    %138 = vmatpush2.msra.mxu0 0.0
    %139 = vmatprep.subr.mxu0 0.0
    %140 = vmatpush2.msra.mxu0 0.0
    %141 = vmatprep.subr.mxu0 0.0
    %142 = vmatpush2.msra.mxu0 0.0
    %143 = vmatprep.subr.mxu0 0.0
    %144 = vmatpush2.msra.mxu0 0.0
    %145 = vmatprep.subr.mxu0 0.0
    %146 = vmatpush2.msra.mxu0 0.0
    %147 = vmatprep.subr.mxu0 0.0
    %148 = vmatpush2.msra.mxu0 0.0
    %149 = vmatprep.subr.mxu0 0.0
    %150 = vmatpush2.msra.mxu0 0.0
    %151 = vmatprep.subr.mxu0 0.0
    %152 = vmatpush2.msra.mxu0 0.0
    %153 = vmatprep.subr.mxu0 0.0
    %154 = vmatpush2.msra.mxu0 0.0
    %155 = vmatprep.subr.mxu0 0.0
    %156 = vmatpush2.msra.mxu0 0.0
    %157 = vmatprep.subr.mxu0 0.0
    %158 = vmatpush2.msra.mxu0 0.0
    %159 = vmatprep.subr.mxu0 0.0
    %160 = vmatpush2.msra.mxu0 0.0
    %161 = vmatprep.subr.mxu0 0.0
    %162 = vmatpush2.msra.mxu0 0.0
    %163 = vmatprep.mubr.f32.mxu0 0.0
    %v164 = vand.u32 %v93, 4294901760
    %v165 = vsub.f32 %v93, %v164
    %v166 = vand.u32 %v165, 4294901760
    %v167 = vsub.f32 %v165, %v166
    %v168 = vand.u32 %v167, 4294901760
    %169 = vmatmul.mubr.f32.gmra.mxu0 %v168
    %v170 = vpop.f32.mrf.mxu0
    %v171 = vadd.f32 %v89, %v170
    %v172 = vpop.f32.mrf.mxu0
    %173 = vdwg.mxu0
    %174 = vmatprep.subr.mxu0 0.0
    %175 = vmatpush1.msra.mxu0 0.0
    %176 = vmatprep.subr.mxu0 0.0
    %177 = vmatpush1.msra.mxu0 0.0
    %178 = vmatprep.subr.mxu0 0.0
    %179 = vmatpush1.msra.mxu0 0.0
    %180 = vmatprep.subr.mxu0 0.0
    %181 = vmatpush1.msra.mxu0 0.0
    %182 = vmatprep.subr.mxu0 0.0
    %183 = vmatpush1.msra.mxu0 0.0
    %184 = vmatprep.subr.mxu0 0.0
    %185 = vmatpush1.msra.mxu0 0.0
    %186 = vmatprep.subr.mxu0 0.0
    %187 = vmatpush1.msra.mxu0 0.0
    %188 = vmatprep.subr.mxu0 0.0
    %189 = vmatpush1.msra.mxu0 0.0
    %190 = vmatprep.subr.mxu0 0.0
    %191 = vmatpush1.msra.mxu0 0.0
    %192 = vmatprep.subr.mxu0 0.0
    %193 = vmatpush1.msra.mxu0 0.0
    %194 = vmatprep.subr.mxu0 0.0
    %195 = vmatpush1.msra.mxu0 0.0
    %196 = vmatprep.subr.mxu0 0.0
    %197 = vmatpush1.msra.mxu0 0.0
    %198 = vmatprep.subr.mxu0 0.0
    %v199 = vand.u32 %v83, 4294901760
    %v200 = vsub.f32 %v83, %v199
    %v201 = vand.u32 %v200, 4294901760
    %v202 = vsub.f32 %v200, %v201
    %v203 = vand.u32 %v202, 4294901760
    %204 = vmatpush1.msra.mxu0 %v203
    %205 = vmatprep.subr.mxu0 0.0
    %v206 = vand.u32 %v82, 4294901760
    %v207 = vsub.f32 %v82, %v206
    %v208 = vand.u32 %v207, 4294901760
    %v209 = vsub.f32 %v207, %v208
    %v210 = vand.u32 %v209, 4294901760
    %211 = vmatpush1.msra.mxu0 %v210
    %212 = vmatprep.subr.mxu0 0.0
    %v213 = vand.u32 %v81, 4294901760
    %v214 = vsub.f32 %v81, %v213
    %v215 = vand.u32 %v214, 4294901760
    %v216 = vsub.f32 %v214, %v215
    %v217 = vand.u32 %v216, 4294901760
    %218 = vmatpush1.msra.mxu0 %v217
    %219 = vmatprep.subr.mxu0 0.0
    %v220 = vand.u32 %v80, 4294901760
    %v221 = vsub.f32 %v80, %v220
    %v222 = vand.u32 %v221, 4294901760
    %v223 = vsub.f32 %v221, %v222
    %v224 = vand.u32 %v223, 4294901760
    %225 = vmatpush1.msra.mxu0 %v224
    %226 = vmatprep.subr.mxu0 0.0
    %227 = vmatpush2.msra.mxu0 0.0
    %228 = vmatprep.subr.mxu0 0.0
    %229 = vmatpush2.msra.mxu0 0.0
    %230 = vmatprep.subr.mxu0 0.0
    %231 = vmatpush2.msra.mxu0 0.0
    %232 = vmatprep.subr.mxu0 0.0
    %233 = vmatpush2.msra.mxu0 0.0
    %234 = vmatprep.subr.mxu0 0.0
    %235 = vmatpush2.msra.mxu0 0.0
    %236 = vmatprep.subr.mxu0 0.0
    %237 = vmatpush2.msra.mxu0 0.0
    %238 = vmatprep.subr.mxu0 0.0
    %239 = vmatpush2.msra.mxu0 0.0
    %240 = vmatprep.subr.mxu0 0.0
    %241 = vmatpush2.msra.mxu0 0.0
    %242 = vmatprep.subr.mxu0 0.0
    %243 = vmatpush2.msra.mxu0 0.0
    %244 = vmatprep.subr.mxu0 0.0
    %245 = vmatpush2.msra.mxu0 0.0
    %246 = vmatprep.subr.mxu0 0.0
    %247 = vmatpush2.msra.mxu0 0.0
    %248 = vmatprep.subr.mxu0 0.0
    %249 = vmatpush2.msra.mxu0 0.0
    %250 = vmatprep.subr.mxu0 0.0
    %251 = vmatpush2.msra.mxu0 0.0
    %252 = vmatprep.subr.mxu0 0.0
    %253 = vmatpush2.msra.mxu0 0.0
    %254 = vmatprep.subr.mxu0 0.0
    %255 = vmatpush2.msra.mxu0 0.0
    %256 = vmatprep.subr.mxu0 0.0
    %257 = vmatpush2.msra.mxu0 0.0
    %258 = vmatprep.mubr.f32.mxu0 0.0
    %v259 = vand.u32 %v93, 4294901760
    %260 = vmatmul.mubr.f32.gmra.mxu0 %v259
    %v261 = vpop.f32.mrf.mxu0
    %v262 = vadd.f32 %v171, %v261
    %v263 = vpop.f32.mrf.mxu0
    %264 = vdwg.mxu0
    %265 = vmatprep.subr.mxu0 0.0
    %266 = vmatpush1.msra.mxu0 0.0
    %267 = vmatprep.subr.mxu0 0.0
    %268 = vmatpush1.msra.mxu0 0.0
    %269 = vmatprep.subr.mxu0 0.0
    %270 = vmatpush1.msra.mxu0 0.0
    %271 = vmatprep.subr.mxu0 0.0
    %272 = vmatpush1.msra.mxu0 0.0
    %273 = vmatprep.subr.mxu0 0.0
    %274 = vmatpush1.msra.mxu0 0.0
    %275 = vmatprep.subr.mxu0 0.0
    %276 = vmatpush1.msra.mxu0 0.0
    %277 = vmatprep.subr.mxu0 0.0
    %278 = vmatpush1.msra.mxu0 0.0
    %279 = vmatprep.subr.mxu0 0.0
    %280 = vmatpush1.msra.mxu0 0.0
    %281 = vmatprep.subr.mxu0 0.0
    %282 = vmatpush1.msra.mxu0 0.0
    %283 = vmatprep.subr.mxu0 0.0
    %284 = vmatpush1.msra.mxu0 0.0
    %285 = vmatprep.subr.mxu0 0.0
    %286 = vmatpush1.msra.mxu0 0.0
    %287 = vmatprep.subr.mxu0 0.0
    %288 = vmatpush1.msra.mxu0 0.0
    %289 = vmatprep.subr.mxu0 0.0
    %v290 = vand.u32 %v83, 4294901760
    %v291 = vsub.f32 %v83, %v290
    %292 = vmatpush1.msra.mxu0 %v291
    %293 = vmatprep.subr.mxu0 0.0
    %v294 = vand.u32 %v82, 4294901760
    %v295 = vsub.f32 %v82, %v294
    %296 = vmatpush1.msra.mxu0 %v295
    %297 = vmatprep.subr.mxu0 0.0
    %v298 = vand.u32 %v81, 4294901760
    %v299 = vsub.f32 %v81, %v298
    %300 = vmatpush1.msra.mxu0 %v299
    %301 = vmatprep.subr.mxu0 0.0
    %v302 = vand.u32 %v80, 4294901760
    %v303 = vsub.f32 %v80, %v302
    %304 = vmatpush1.msra.mxu0 %v303
    %305 = vmatprep.subr.mxu0 0.0
    %306 = vmatpush2.msra.mxu0 0.0
    %307 = vmatprep.subr.mxu0 0.0
    %308 = vmatpush2.msra.mxu0 0.0
    %309 = vmatprep.subr.mxu0 0.0
    %310 = vmatpush2.msra.mxu0 0.0
    %311 = vmatprep.subr.mxu0 0.0
    %312 = vmatpush2.msra.mxu0 0.0
    %313 = vmatprep.subr.mxu0 0.0
    %314 = vmatpush2.msra.mxu0 0.0
    %315 = vmatprep.subr.mxu0 0.0
    %316 = vmatpush2.msra.mxu0 0.0
    %317 = vmatprep.subr.mxu0 0.0
    %318 = vmatpush2.msra.mxu0 0.0
    %319 = vmatprep.subr.mxu0 0.0
    %320 = vmatpush2.msra.mxu0 0.0
    %321 = vmatprep.subr.mxu0 0.0
    %322 = vmatpush2.msra.mxu0 0.0
    %323 = vmatprep.subr.mxu0 0.0
    %324 = vmatpush2.msra.mxu0 0.0
    %325 = vmatprep.subr.mxu0 0.0
    %326 = vmatpush2.msra.mxu0 0.0
    %327 = vmatprep.subr.mxu0 0.0
    %328 = vmatpush2.msra.mxu0 0.0
    %329 = vmatprep.subr.mxu0 0.0
    %330 = vmatpush2.msra.mxu0 0.0
    %331 = vmatprep.subr.mxu0 0.0
    %332 = vmatpush2.msra.mxu0 0.0
    %333 = vmatprep.subr.mxu0 0.0
    %334 = vmatpush2.msra.mxu0 0.0
    %335 = vmatprep.subr.mxu0 0.0
    %336 = vmatpush2.msra.mxu0 0.0
    %337 = vmatprep.mubr.f32.mxu0 0.0
    %v338 = vand.u32 %v93, 4294901760
    %v339 = vsub.f32 %v93, %v338
    %340 = vmatmul.mubr.f32.gmra.mxu0 %v339
    %v341 = vpop.f32.mrf.mxu0
    %v342 = vadd.f32 %v262, %v341
    %v343 = vpop.f32.mrf.mxu0
    %344 = vdwg.mxu0
    %345 = vmatprep.subr.mxu0 0.0
    %346 = vmatpush1.msra.mxu0 0.0
    %347 = vmatprep.subr.mxu0 0.0
    %348 = vmatpush1.msra.mxu0 0.0
    %349 = vmatprep.subr.mxu0 0.0
    %350 = vmatpush1.msra.mxu0 0.0
    %351 = vmatprep.subr.mxu0 0.0
    %352 = vmatpush1.msra.mxu0 0.0
    %353 = vmatprep.subr.mxu0 0.0
    %354 = vmatpush1.msra.mxu0 0.0
    %355 = vmatprep.subr.mxu0 0.0
    %356 = vmatpush1.msra.mxu0 0.0
    %357 = vmatprep.subr.mxu0 0.0
    %358 = vmatpush1.msra.mxu0 0.0
    %359 = vmatprep.subr.mxu0 0.0
    %360 = vmatpush1.msra.mxu0 0.0
    %361 = vmatprep.subr.mxu0 0.0
    %362 = vmatpush1.msra.mxu0 0.0
    %363 = vmatprep.subr.mxu0 0.0
    %364 = vmatpush1.msra.mxu0 0.0
    %365 = vmatprep.subr.mxu0 0.0
    %366 = vmatpush1.msra.mxu0 0.0
    %367 = vmatprep.subr.mxu0 0.0
    %368 = vmatpush1.msra.mxu0 0.0
    %369 = vmatprep.subr.mxu0 0.0
    %v370 = vand.u32 %v83, 4294901760
    %371 = vmatpush1.msra.mxu0 %v370
    %372 = vmatprep.subr.mxu0 0.0
    %v373 = vand.u32 %v82, 4294901760
    %374 = vmatpush1.msra.mxu0 %v373
    %375 = vmatprep.subr.mxu0 0.0
    %v376 = vand.u32 %v81, 4294901760
    %377 = vmatpush1.msra.mxu0 %v376
    %378 = vmatprep.subr.mxu0 0.0
    %v379 = vand.u32 %v80, 4294901760
    %380 = vmatpush1.msra.mxu0 %v379
    %381 = vmatprep.subr.mxu0 0.0
    %382 = vmatpush2.msra.mxu0 0.0
    %383 = vmatprep.subr.mxu0 0.0
    %384 = vmatpush2.msra.mxu0 0.0
    %385 = vmatprep.subr.mxu0 0.0
    %386 = vmatpush2.msra.mxu0 0.0
    %387 = vmatprep.subr.mxu0 0.0
    %388 = vmatpush2.msra.mxu0 0.0
    %389 = vmatprep.subr.mxu0 0.0
    %390 = vmatpush2.msra.mxu0 0.0
    %391 = vmatprep.subr.mxu0 0.0
    %392 = vmatpush2.msra.mxu0 0.0
    %393 = vmatprep.subr.mxu0 0.0
    %394 = vmatpush2.msra.mxu0 0.0
    %395 = vmatprep.subr.mxu0 0.0
    %396 = vmatpush2.msra.mxu0 0.0
    %397 = vmatprep.subr.mxu0 0.0
    %398 = vmatpush2.msra.mxu0 0.0
    %399 = vmatprep.subr.mxu0 0.0
    %400 = vmatpush2.msra.mxu0 0.0
    %401 = vmatprep.subr.mxu0 0.0
    %402 = vmatpush2.msra.mxu0 0.0
    %403 = vmatprep.subr.mxu0 0.0
    %404 = vmatpush2.msra.mxu0 0.0
    %405 = vmatprep.subr.mxu0 0.0
    %406 = vmatpush2.msra.mxu0 0.0
    %407 = vmatprep.subr.mxu0 0.0
    %408 = vmatpush2.msra.mxu0 0.0
    %409 = vmatprep.subr.mxu0 0.0
    %410 = vmatpush2.msra.mxu0 0.0
    %411 = vmatprep.subr.mxu0 0.0
    %412 = vmatpush2.msra.mxu0 0.0
    %413 = vmatprep.mubr.f32.mxu0 0.0
    %v414 = vand.u32 %v93, 4294901760
    %v415 = vsub.f32 %v93, %v414
    %v416 = vand.u32 %v415, 4294901760
    %417 = vmatmul.mubr.f32.gmra.mxu0 %v416
    %v418 = vpop.f32.mrf.mxu0
    %v419 = vadd.f32 %v342, %v418
    %v420 = vpop.f32.mrf.mxu0
    %421 = vdwg.mxu0
    %422 = vmatprep.subr.mxu0 0.0
    %423 = vmatpush1.msra.mxu0 0.0
    %424 = vmatprep.subr.mxu0 0.0
    %425 = vmatpush1.msra.mxu0 0.0
    %426 = vmatprep.subr.mxu0 0.0
    %427 = vmatpush1.msra.mxu0 0.0
    %428 = vmatprep.subr.mxu0 0.0
    %429 = vmatpush1.msra.mxu0 0.0
    %430 = vmatprep.subr.mxu0 0.0
    %431 = vmatpush1.msra.mxu0 0.0
    %432 = vmatprep.subr.mxu0 0.0
    %433 = vmatpush1.msra.mxu0 0.0
    %434 = vmatprep.subr.mxu0 0.0
    %435 = vmatpush1.msra.mxu0 0.0
    %436 = vmatprep.subr.mxu0 0.0
    %437 = vmatpush1.msra.mxu0 0.0
    %438 = vmatprep.subr.mxu0 0.0
    %439 = vmatpush1.msra.mxu0 0.0
    %440 = vmatprep.subr.mxu0 0.0
    %441 = vmatpush1.msra.mxu0 0.0
    %442 = vmatprep.subr.mxu0 0.0
    %443 = vmatpush1.msra.mxu0 0.0
    %444 = vmatprep.subr.mxu0 0.0
    %445 = vmatpush1.msra.mxu0 0.0
    %446 = vmatprep.subr.mxu0 0.0
    %v447 = vand.u32 %v83, 4294901760
    %v448 = vsub.f32 %v83, %v447
    %v449 = vand.u32 %v448, 4294901760
    %450 = vmatpush1.msra.mxu0 %v449
    %451 = vmatprep.subr.mxu0 0.0
    %v452 = vand.u32 %v82, 4294901760
    %v453 = vsub.f32 %v82, %v452
    %v454 = vand.u32 %v453, 4294901760
    %455 = vmatpush1.msra.mxu0 %v454
    %456 = vmatprep.subr.mxu0 0.0
    %v457 = vand.u32 %v81, 4294901760
    %v458 = vsub.f32 %v81, %v457
    %v459 = vand.u32 %v458, 4294901760
    %460 = vmatpush1.msra.mxu0 %v459
    %461 = vmatprep.subr.mxu0 0.0
    %v462 = vand.u32 %v80, 4294901760
    %v463 = vsub.f32 %v80, %v462
    %v464 = vand.u32 %v463, 4294901760
    %465 = vmatpush1.msra.mxu0 %v464
    %466 = vmatprep.subr.mxu0 0.0
    %467 = vmatpush2.msra.mxu0 0.0
    %468 = vmatprep.subr.mxu0 0.0
    %469 = vmatpush2.msra.mxu0 0.0
    %470 = vmatprep.subr.mxu0 0.0
    %471 = vmatpush2.msra.mxu0 0.0
    %472 = vmatprep.subr.mxu0 0.0
    %473 = vmatpush2.msra.mxu0 0.0
    %474 = vmatprep.subr.mxu0 0.0
    %475 = vmatpush2.msra.mxu0 0.0
    %476 = vmatprep.subr.mxu0 0.0
    %477 = vmatpush2.msra.mxu0 0.0
    %478 = vmatprep.subr.mxu0 0.0
    %479 = vmatpush2.msra.mxu0 0.0
    %480 = vmatprep.subr.mxu0 0.0
    %481 = vmatpush2.msra.mxu0 0.0
    %482 = vmatprep.subr.mxu0 0.0
    %483 = vmatpush2.msra.mxu0 0.0
    %484 = vmatprep.subr.mxu0 0.0
    %485 = vmatpush2.msra.mxu0 0.0
    %486 = vmatprep.subr.mxu0 0.0
    %487 = vmatpush2.msra.mxu0 0.0
    %488 = vmatprep.subr.mxu0 0.0
    %489 = vmatpush2.msra.mxu0 0.0
    %490 = vmatprep.subr.mxu0 0.0
    %491 = vmatpush2.msra.mxu0 0.0
    %492 = vmatprep.subr.mxu0 0.0
    %493 = vmatpush2.msra.mxu0 0.0
    %494 = vmatprep.subr.mxu0 0.0
    %495 = vmatpush2.msra.mxu0 0.0
    %496 = vmatprep.subr.mxu0 0.0
    %497 = vmatpush2.msra.mxu0 0.0
    %498 = vmatprep.mubr.f32.mxu0 0.0
    %v499 = vand.u32 %v93, 4294901760
    %500 = vmatmul.mubr.f32.gmra.mxu0 %v499
    %v501 = vpop.f32.mrf.mxu0
    %v502 = vadd.f32 %v419, %v501
    %v503 = vpop.f32.mrf.mxu0
    %504 = vdwg.mxu0
    %505 = vmatprep.subr.mxu0 0.0
    %506 = vmatpush1.msra.mxu0 0.0
    %507 = vmatprep.subr.mxu0 0.0
    %508 = vmatpush1.msra.mxu0 0.0
    %509 = vmatprep.subr.mxu0 0.0
    %510 = vmatpush1.msra.mxu0 0.0
    %511 = vmatprep.subr.mxu0 0.0
    %512 = vmatpush1.msra.mxu0 0.0
    %513 = vmatprep.subr.mxu0 0.0
    %514 = vmatpush1.msra.mxu0 0.0
    %515 = vmatprep.subr.mxu0 0.0
    %516 = vmatpush1.msra.mxu0 0.0
    %517 = vmatprep.subr.mxu0 0.0
    %518 = vmatpush1.msra.mxu0 0.0
    %519 = vmatprep.subr.mxu0 0.0
    %520 = vmatpush1.msra.mxu0 0.0
    %521 = vmatprep.subr.mxu0 0.0
    %522 = vmatpush1.msra.mxu0 0.0
    %523 = vmatprep.subr.mxu0 0.0
    %524 = vmatpush1.msra.mxu0 0.0
    %525 = vmatprep.subr.mxu0 0.0
    %526 = vmatpush1.msra.mxu0 0.0
    %527 = vmatprep.subr.mxu0 0.0
    %528 = vmatpush1.msra.mxu0 0.0
    %529 = vmatprep.subr.mxu0 0.0
    %v530 = vand.u32 %v83, 4294901760
    %531 = vmatpush1.msra.mxu0 %v530
    %532 = vmatprep.subr.mxu0 0.0
    %v533 = vand.u32 %v82, 4294901760
    %534 = vmatpush1.msra.mxu0 %v533
    %535 = vmatprep.subr.mxu0 0.0
    %v536 = vand.u32 %v81, 4294901760
    %537 = vmatpush1.msra.mxu0 %v536
    %538 = vmatprep.subr.mxu0 0.0
    %v539 = vand.u32 %v80, 4294901760
    %540 = vmatpush1.msra.mxu0 %v539
    %541 = vmatprep.subr.mxu0 0.0
    %542 = vmatpush2.msra.mxu0 0.0
    %543 = vmatprep.subr.mxu0 0.0
    %544 = vmatpush2.msra.mxu0 0.0
    %545 = vmatprep.subr.mxu0 0.0
    %546 = vmatpush2.msra.mxu0 0.0
    %547 = vmatprep.subr.mxu0 0.0
    %548 = vmatpush2.msra.mxu0 0.0
    %549 = vmatprep.subr.mxu0 0.0
    %550 = vmatpush2.msra.mxu0 0.0
    %551 = vmatprep.subr.mxu0 0.0
    %552 = vmatpush2.msra.mxu0 0.0
    %553 = vmatprep.subr.mxu0 0.0
    %554 = vmatpush2.msra.mxu0 0.0
    %555 = vmatprep.subr.mxu0 0.0
    %556 = vmatpush2.msra.mxu0 0.0
    %557 = vmatprep.subr.mxu0 0.0
    %558 = vmatpush2.msra.mxu0 0.0
    %559 = vmatprep.subr.mxu0 0.0
    %560 = vmatpush2.msra.mxu0 0.0
    %561 = vmatprep.subr.mxu0 0.0
    %562 = vmatpush2.msra.mxu0 0.0
    %563 = vmatprep.subr.mxu0 0.0
    %564 = vmatpush2.msra.mxu0 0.0
    %565 = vmatprep.subr.mxu0 0.0
    %566 = vmatpush2.msra.mxu0 0.0
    %567 = vmatprep.subr.mxu0 0.0
    %568 = vmatpush2.msra.mxu0 0.0
    %569 = vmatprep.subr.mxu0 0.0
    %570 = vmatpush2.msra.mxu0 0.0
    %571 = vmatprep.subr.mxu0 0.0
    %572 = vmatpush2.msra.mxu0 0.0
    %573 = vmatprep.mubr.f32.mxu0 0.0
    %v574 = vand.u32 %v93, 4294901760
    %575 = vmatmul.mubr.f32.gmra.mxu0 %v574
    %v576 = vpop.f32.mrf.mxu0
    %v577 = vadd.f32 %v502, %v576
    %v578 = vpop.f32.mrf.mxu0
    %579 = vdwg.mxu0
    %v580 = vmul.f32 %v577, 0.5
    %v581 = vrcp.pop 1.4142135
    %v582 = vmul.f32 %v577, %v581
    %v583 = verf.f32.pop %v582
    %v584 = vadd.f32 %v583, 1.0
    %v585 = vmul.f32 %v580, %v584
    %v586 = vld [vmem:[#allocation6] sm:$0xff]
    %v587 = vld [vmem:[#allocation6 + $0x8] sm:$0xff]
    %v588 = vld [vmem:[#allocation6 + $0x10] sm:$0xff]
    %v589 = vld [vmem:[#allocation6 + $0x18] sm:$0xff]
    %v590 = vld [vmem:[#allocation6 + $0x20] sm:$0xff]
    %v591 = vld [vmem:[#allocation6 + $0x28] sm:$0xff]
    %v592 = vld [vmem:[#allocation6 + $0x30] sm:$0xff]
    %v593 = vld [vmem:[#allocation6 + $0x38] sm:$0xff]
    %v594 = vld [vmem:[#allocation6 + $0x40] sm:$0xff]
    %v595 = vld [vmem:[#allocation6 + $0x48] sm:$0xff]
    %v596 = vld [vmem:[#allocation6 + $0x50] sm:$0xff]
    %v597 = vld [vmem:[#allocation6 + $0x58] sm:$0xff]
    %v598 = vld [vmem:[#allocation6 + $0x60] sm:$0xff]
    %v599 = vld [vmem:[#allocation6 + $0x68] sm:$0xff]
    %v600 = vld [vmem:[#allocation6 + $0x70] sm:$0xff]
    %v601 = vld [vmem:[#allocation6 + $0x78] sm:$0xff]
    %v602 = vld [vmem:[%s4] sm:$0x1]
    %v604 = vlaneseq
    %v605 = vshrl.u32 %v604, 7
    %v606 = vsub.s32 0, %v605
    %v607 = vrot.slane %v602, %v606
    %609 = vmatprep.subr.mxu0 0.0
    %v610 = vand.u32 %v601, 4294901760
    %611 = vmatpush1.msra.mxu0 %v610
    %612 = vmatprep.subr.mxu0 0.0
    %v613 = vand.u32 %v600, 4294901760
    %614 = vmatpush1.msra.mxu0 %v613
    %615 = vmatprep.subr.mxu0 0.0
    %v616 = vand.u32 %v599, 4294901760
    %617 = vmatpush1.msra.mxu0 %v616
    %618 = vmatprep.subr.mxu0 0.0
    %v619 = vand.u32 %v598, 4294901760
    %620 = vmatpush1.msra.mxu0 %v619
    %621 = vmatprep.subr.mxu0 0.0
    %v622 = vand.u32 %v597, 4294901760
    %623 = vmatpush1.msra.mxu0 %v622
    %624 = vmatprep.subr.mxu0 0.0
    %v625 = vand.u32 %v596, 4294901760
    %626 = vmatpush1.msra.mxu0 %v625
    %627 = vmatprep.subr.mxu0 0.0
    %v628 = vand.u32 %v595, 4294901760
    %629 = vmatpush1.msra.mxu0 %v628
    %630 = vmatprep.subr.mxu0 0.0
    %v631 = vand.u32 %v594, 4294901760
    %632 = vmatpush1.msra.mxu0 %v631
    %633 = vmatprep.subr.mxu0 0.0
    %v634 = vand.u32 %v593, 4294901760
    %635 = vmatpush1.msra.mxu0 %v634
    %636 = vmatprep.subr.mxu0 0.0
    %v637 = vand.u32 %v592, 4294901760
    %638 = vmatpush1.msra.mxu0 %v637
    %639 = vmatprep.subr.mxu0 0.0
    %v640 = vand.u32 %v591, 4294901760
    %641 = vmatpush1.msra.mxu0 %v640
    %642 = vmatprep.subr.mxu0 0.0
    %v643 = vand.u32 %v590, 4294901760
    %644 = vmatpush1.msra.mxu0 %v643
    %645 = vmatprep.subr.mxu0 0.0
    %v646 = vand.u32 %v589, 4294901760
    %647 = vmatpush1.msra.mxu0 %v646
    %648 = vmatprep.subr.mxu0 0.0
    %v649 = vand.u32 %v588, 4294901760
    %650 = vmatpush1.msra.mxu0 %v649
    %651 = vmatprep.subr.mxu0 0.0
    %v652 = vand.u32 %v587, 4294901760
    %653 = vmatpush1.msra.mxu0 %v652
    %654 = vmatprep.subr.mxu0 0.0
    %v655 = vand.u32 %v586, 4294901760
    %656 = vmatpush1.msra.mxu0 %v655
    %657 = vmatprep.subr.mxu0 0.0
    %658 = vmatpush2.msra.mxu0 0.0
    %659 = vmatprep.subr.mxu0 0.0
    %660 = vmatpush2.msra.mxu0 0.0
    %661 = vmatprep.subr.mxu0 0.0
    %662 = vmatpush2.msra.mxu0 0.0
    %663 = vmatprep.subr.mxu0 0.0
    %664 = vmatpush2.msra.mxu0 0.0
    %665 = vmatprep.subr.mxu0 0.0
    %666 = vmatpush2.msra.mxu0 0.0
    %667 = vmatprep.subr.mxu0 0.0
    %668 = vmatpush2.msra.mxu0 0.0
    %669 = vmatprep.subr.mxu0 0.0
    %670 = vmatpush2.msra.mxu0 0.0
    %671 = vmatprep.subr.mxu0 0.0
    %672 = vmatpush2.msra.mxu0 0.0
    %673 = vmatprep.subr.mxu0 0.0
    %674 = vmatpush2.msra.mxu0 0.0
    %675 = vmatprep.subr.mxu0 0.0
    %676 = vmatpush2.msra.mxu0 0.0
    %677 = vmatprep.subr.mxu0 0.0
    %678 = vmatpush2.msra.mxu0 0.0
    %679 = vmatprep.subr.mxu0 0.0
    %680 = vmatpush2.msra.mxu0 0.0
    %681 = vmatprep.subr.mxu0 0.0
    %682 = vmatpush2.msra.mxu0 0.0
    %683 = vmatprep.subr.mxu0 0.0
    %684 = vmatpush2.msra.mxu0 0.0
    %685 = vmatprep.subr.mxu0 0.0
    %686 = vmatpush2.msra.mxu0 0.0
    %687 = vmatprep.subr.mxu0 0.0
    %688 = vmatpush2.msra.mxu0 0.0
    %689 = vmatprep.mubr.f32.mxu0 0.0
    %v690 = vand.u32 %v585, 4294901760
    %v691 = vsub.f32 %v585, %v690
    %v692 = vand.u32 %v691, 4294901760
    %v693 = vsub.f32 %v691, %v692
    %v694 = vand.u32 %v693, 4294901760
    %695 = vmatmul.mubr.f32.gmra.mxu0 %v694
    %v696 = vpop.f32.mrf.mxu0
    %v697 = vadd.f32 %v607, %v696
    %v698 = vpop.f32.mrf.mxu0
    %699 = vdwg.mxu0
    %700 = vmatprep.subr.mxu0 0.0
    %v701 = vand.u32 %v601, 4294901760
    %v702 = vsub.f32 %v601, %v701
    %v703 = vand.u32 %v702, 4294901760
    %v704 = vsub.f32 %v702, %v703
    %v705 = vand.u32 %v704, 4294901760
    %706 = vmatpush1.msra.mxu0 %v705
    %707 = vmatprep.subr.mxu0 0.0
    %v708 = vand.u32 %v600, 4294901760
    %v709 = vsub.f32 %v600, %v708
    %v710 = vand.u32 %v709, 4294901760
    %v711 = vsub.f32 %v709, %v710
    %v712 = vand.u32 %v711, 4294901760
    %713 = vmatpush1.msra.mxu0 %v712
    %714 = vmatprep.subr.mxu0 0.0
    %v715 = vand.u32 %v599, 4294901760
    %v716 = vsub.f32 %v599, %v715
    %v717 = vand.u32 %v716, 4294901760
    %v718 = vsub.f32 %v716, %v717
    %v719 = vand.u32 %v718, 4294901760
    %720 = vmatpush1.msra.mxu0 %v719
    %721 = vmatprep.subr.mxu0 0.0
    %v722 = vand.u32 %v598, 4294901760
    %v723 = vsub.f32 %v598, %v722
    %v724 = vand.u32 %v723, 4294901760
    %v725 = vsub.f32 %v723, %v724
    %v726 = vand.u32 %v725, 4294901760
    %727 = vmatpush1.msra.mxu0 %v726
    %728 = vmatprep.subr.mxu0 0.0
    %v729 = vand.u32 %v597, 4294901760
    %v730 = vsub.f32 %v597, %v729
    %v731 = vand.u32 %v730, 4294901760
    %v732 = vsub.f32 %v730, %v731
    %v733 = vand.u32 %v732, 4294901760
    %734 = vmatpush1.msra.mxu0 %v733
    %735 = vmatprep.subr.mxu0 0.0
    %v736 = vand.u32 %v596, 4294901760
    %v737 = vsub.f32 %v596, %v736
    %v738 = vand.u32 %v737, 4294901760
    %v739 = vsub.f32 %v737, %v738
    %v740 = vand.u32 %v739, 4294901760
    %741 = vmatpush1.msra.mxu0 %v740
    %742 = vmatprep.subr.mxu0 0.0
    %v743 = vand.u32 %v595, 4294901760
    %v744 = vsub.f32 %v595, %v743
    %v745 = vand.u32 %v744, 4294901760
    %v746 = vsub.f32 %v744, %v745
    %v747 = vand.u32 %v746, 4294901760
    %748 = vmatpush1.msra.mxu0 %v747
    %749 = vmatprep.subr.mxu0 0.0
    %v750 = vand.u32 %v594, 4294901760
    %v751 = vsub.f32 %v594, %v750
    %v752 = vand.u32 %v751, 4294901760
    %v753 = vsub.f32 %v751, %v752
    %v754 = vand.u32 %v753, 4294901760
    %755 = vmatpush1.msra.mxu0 %v754
    %756 = vmatprep.subr.mxu0 0.0
    %v757 = vand.u32 %v593, 4294901760
    %v758 = vsub.f32 %v593, %v757
    %v759 = vand.u32 %v758, 4294901760
    %v760 = vsub.f32 %v758, %v759
    %v761 = vand.u32 %v760, 4294901760
    %762 = vmatpush1.msra.mxu0 %v761
    %763 = vmatprep.subr.mxu0 0.0
    %v764 = vand.u32 %v592, 4294901760
    %v765 = vsub.f32 %v592, %v764
    %v766 = vand.u32 %v765, 4294901760
    %v767 = vsub.f32 %v765, %v766
    %v768 = vand.u32 %v767, 4294901760
    %769 = vmatpush1.msra.mxu0 %v768
    %770 = vmatprep.subr.mxu0 0.0
    %v771 = vand.u32 %v591, 4294901760
    %v772 = vsub.f32 %v591, %v771
    %v773 = vand.u32 %v772, 4294901760
    %v774 = vsub.f32 %v772, %v773
    %v775 = vand.u32 %v774, 4294901760
    %776 = vmatpush1.msra.mxu0 %v775
    %777 = vmatprep.subr.mxu0 0.0
    %v778 = vand.u32 %v590, 4294901760
    %v779 = vsub.f32 %v590, %v778
    %v780 = vand.u32 %v779, 4294901760
    %v781 = vsub.f32 %v779, %v780
    %v782 = vand.u32 %v781, 4294901760
    %783 = vmatpush1.msra.mxu0 %v782
    %784 = vmatprep.subr.mxu0 0.0
    %v785 = vand.u32 %v589, 4294901760
    %v786 = vsub.f32 %v589, %v785
    %v787 = vand.u32 %v786, 4294901760
    %v788 = vsub.f32 %v786, %v787
    %v789 = vand.u32 %v788, 4294901760
    %790 = vmatpush1.msra.mxu0 %v789
    %791 = vmatprep.subr.mxu0 0.0
    %v792 = vand.u32 %v588, 4294901760
    %v793 = vsub.f32 %v588, %v792
    %v794 = vand.u32 %v793, 4294901760
    %v795 = vsub.f32 %v793, %v794
    %v796 = vand.u32 %v795, 4294901760
    %797 = vmatpush1.msra.mxu0 %v796
    %798 = vmatprep.subr.mxu0 0.0
    %v799 = vand.u32 %v587, 4294901760
    %v800 = vsub.f32 %v587, %v799
    %v801 = vand.u32 %v800, 4294901760
    %v802 = vsub.f32 %v800, %v801
    %v803 = vand.u32 %v802, 4294901760
    %804 = vmatpush1.msra.mxu0 %v803
    %805 = vmatprep.subr.mxu0 0.0
    %v806 = vand.u32 %v586, 4294901760
    %v807 = vsub.f32 %v586, %v806
    %v808 = vand.u32 %v807, 4294901760
    %v809 = vsub.f32 %v807, %v808
    %v810 = vand.u32 %v809, 4294901760
    %811 = vmatpush1.msra.mxu0 %v810
    %812 = vmatprep.subr.mxu0 0.0
    %813 = vmatpush2.msra.mxu0 0.0
    %814 = vmatprep.subr.mxu0 0.0
    %815 = vmatpush2.msra.mxu0 0.0
    %816 = vmatprep.subr.mxu0 0.0
    %817 = vmatpush2.msra.mxu0 0.0
    %818 = vmatprep.subr.mxu0 0.0
    %819 = vmatpush2.msra.mxu0 0.0
    %820 = vmatprep.subr.mxu0 0.0
    %821 = vmatpush2.msra.mxu0 0.0
    %822 = vmatprep.subr.mxu0 0.0
    %823 = vmatpush2.msra.mxu0 0.0
    %824 = vmatprep.subr.mxu0 0.0
    %825 = vmatpush2.msra.mxu0 0.0
    %826 = vmatprep.subr.mxu0 0.0
    %827 = vmatpush2.msra.mxu0 0.0
    %828 = vmatprep.subr.mxu0 0.0
    %829 = vmatpush2.msra.mxu0 0.0
    %830 = vmatprep.subr.mxu0 0.0
    %831 = vmatpush2.msra.mxu0 0.0
    %832 = vmatprep.subr.mxu0 0.0
    %833 = vmatpush2.msra.mxu0 0.0
    %834 = vmatprep.subr.mxu0 0.0
    %835 = vmatpush2.msra.mxu0 0.0
    %836 = vmatprep.subr.mxu0 0.0
    %837 = vmatpush2.msra.mxu0 0.0
    %838 = vmatprep.subr.mxu0 0.0
    %839 = vmatpush2.msra.mxu0 0.0
    %840 = vmatprep.subr.mxu0 0.0
    %841 = vmatpush2.msra.mxu0 0.0
    %842 = vmatprep.subr.mxu0 0.0
    %843 = vmatpush2.msra.mxu0 0.0
    %844 = vmatprep.mubr.f32.mxu0 0.0
    %v845 = vand.u32 %v585, 4294901760
    %846 = vmatmul.mubr.f32.gmra.mxu0 %v845
    %v847 = vpop.f32.mrf.mxu0
    %v848 = vadd.f32 %v697, %v847
    %v849 = vpop.f32.mrf.mxu0
    %850 = vdwg.mxu0
    %851 = vmatprep.subr.mxu0 0.0
    %v852 = vand.u32 %v601, 4294901760
    %v853 = vsub.f32 %v601, %v852
    %854 = vmatpush1.msra.mxu0 %v853
    %855 = vmatprep.subr.mxu0 0.0
    %v856 = vand.u32 %v600, 4294901760
    %v857 = vsub.f32 %v600, %v856
    %858 = vmatpush1.msra.mxu0 %v857
    %859 = vmatprep.subr.mxu0 0.0
    %v860 = vand.u32 %v599, 4294901760
    %v861 = vsub.f32 %v599, %v860
    %862 = vmatpush1.msra.mxu0 %v861
    %863 = vmatprep.subr.mxu0 0.0
    %v864 = vand.u32 %v598, 4294901760
    %v865 = vsub.f32 %v598, %v864
    %866 = vmatpush1.msra.mxu0 %v865
    %867 = vmatprep.subr.mxu0 0.0
    %v868 = vand.u32 %v597, 4294901760
    %v869 = vsub.f32 %v597, %v868
    %870 = vmatpush1.msra.mxu0 %v869
    %871 = vmatprep.subr.mxu0 0.0
    %v872 = vand.u32 %v596, 4294901760
    %v873 = vsub.f32 %v596, %v872
    %874 = vmatpush1.msra.mxu0 %v873
    %875 = vmatprep.subr.mxu0 0.0
    %v876 = vand.u32 %v595, 4294901760
    %v877 = vsub.f32 %v595, %v876
    %878 = vmatpush1.msra.mxu0 %v877
    %879 = vmatprep.subr.mxu0 0.0
    %v880 = vand.u32 %v594, 4294901760
    %v881 = vsub.f32 %v594, %v880
    %882 = vmatpush1.msra.mxu0 %v881
    %883 = vmatprep.subr.mxu0 0.0
    %v884 = vand.u32 %v593, 4294901760
    %v885 = vsub.f32 %v593, %v884
    %886 = vmatpush1.msra.mxu0 %v885
    %887 = vmatprep.subr.mxu0 0.0
    %v888 = vand.u32 %v592, 4294901760
    %v889 = vsub.f32 %v592, %v888
    %890 = vmatpush1.msra.mxu0 %v889
    %891 = vmatprep.subr.mxu0 0.0
    %v892 = vand.u32 %v591, 4294901760
    %v893 = vsub.f32 %v591, %v892
    %894 = vmatpush1.msra.mxu0 %v893
    %895 = vmatprep.subr.mxu0 0.0
    %v896 = vand.u32 %v590, 4294901760
    %v897 = vsub.f32 %v590, %v896
    %898 = vmatpush1.msra.mxu0 %v897
    %899 = vmatprep.subr.mxu0 0.0
    %v900 = vand.u32 %v589, 4294901760
    %v901 = vsub.f32 %v589, %v900
    %902 = vmatpush1.msra.mxu0 %v901
    %903 = vmatprep.subr.mxu0 0.0
    %v904 = vand.u32 %v588, 4294901760
    %v905 = vsub.f32 %v588, %v904
    %906 = vmatpush1.msra.mxu0 %v905
    %907 = vmatprep.subr.mxu0 0.0
    %v908 = vand.u32 %v587, 4294901760
    %v909 = vsub.f32 %v587, %v908
    %910 = vmatpush1.msra.mxu0 %v909
    %911 = vmatprep.subr.mxu0 0.0
    %v912 = vand.u32 %v586, 4294901760
    %v913 = vsub.f32 %v586, %v912
    %914 = vmatpush1.msra.mxu0 %v913
    %915 = vmatprep.subr.mxu0 0.0
    %916 = vmatpush2.msra.mxu0 0.0
    %917 = vmatprep.subr.mxu0 0.0
    %918 = vmatpush2.msra.mxu0 0.0
    %919 = vmatprep.subr.mxu0 0.0
    %920 = vmatpush2.msra.mxu0 0.0
    %921 = vmatprep.subr.mxu0 0.0
    %922 = vmatpush2.msra.mxu0 0.0
    %923 = vmatprep.subr.mxu0 0.0
    %924 = vmatpush2.msra.mxu0 0.0
    %925 = vmatprep.subr.mxu0 0.0
    %926 = vmatpush2.msra.mxu0 0.0
    %927 = vmatprep.subr.mxu0 0.0
    %928 = vmatpush2.msra.mxu0 0.0
    %929 = vmatprep.subr.mxu0 0.0
    %930 = vmatpush2.msra.mxu0 0.0
    %931 = vmatprep.subr.mxu0 0.0
    %932 = vmatpush2.msra.mxu0 0.0
    %933 = vmatprep.subr.mxu0 0.0
    %934 = vmatpush2.msra.mxu0 0.0
    %935 = vmatprep.subr.mxu0 0.0
    %936 = vmatpush2.msra.mxu0 0.0
    %937 = vmatprep.subr.mxu0 0.0
    %938 = vmatpush2.msra.mxu0 0.0
    %939 = vmatprep.subr.mxu0 0.0
    %940 = vmatpush2.msra.mxu0 0.0
    %941 = vmatprep.subr.mxu0 0.0
    %942 = vmatpush2.msra.mxu0 0.0
    %943 = vmatprep.subr.mxu0 0.0
    %944 = vmatpush2.msra.mxu0 0.0
    %945 = vmatprep.subr.mxu0 0.0
    %946 = vmatpush2.msra.mxu0 0.0
    %947 = vmatprep.mubr.f32.mxu0 0.0
    %v948 = vand.u32 %v585, 4294901760
    %v949 = vsub.f32 %v585, %v948
    %950 = vmatmul.mubr.f32.gmra.mxu0 %v949
    %v951 = vpop.f32.mrf.mxu0
    %v952 = vadd.f32 %v848, %v951
    %v953 = vpop.f32.mrf.mxu0
    %954 = vdwg.mxu0
    %955 = vmatprep.subr.mxu0 0.0
    %v956 = vand.u32 %v601, 4294901760
    %957 = vmatpush1.msra.mxu0 %v956
    %958 = vmatprep.subr.mxu0 0.0
    %v959 = vand.u32 %v600, 4294901760
    %960 = vmatpush1.msra.mxu0 %v959
    %961 = vmatprep.subr.mxu0 0.0
    %v962 = vand.u32 %v599, 4294901760
    %963 = vmatpush1.msra.mxu0 %v962
    %964 = vmatprep.subr.mxu0 0.0
    %v965 = vand.u32 %v598, 4294901760
    %966 = vmatpush1.msra.mxu0 %v965
    %967 = vmatprep.subr.mxu0 0.0
    %v968 = vand.u32 %v597, 4294901760
    %969 = vmatpush1.msra.mxu0 %v968
    %970 = vmatprep.subr.mxu0 0.0
    %v971 = vand.u32 %v596, 4294901760
    %972 = vmatpush1.msra.mxu0 %v971
    %973 = vmatprep.subr.mxu0 0.0
    %v974 = vand.u32 %v595, 4294901760
    %975 = vmatpush1.msra.mxu0 %v974
    %976 = vmatprep.subr.mxu0 0.0
    %v977 = vand.u32 %v594, 4294901760
    %978 = vmatpush1.msra.mxu0 %v977
    %979 = vmatprep.subr.mxu0 0.0
    %v980 = vand.u32 %v593, 4294901760
    %981 = vmatpush1.msra.mxu0 %v980
    %982 = vmatprep.subr.mxu0 0.0
    %v983 = vand.u32 %v592, 4294901760
    %984 = vmatpush1.msra.mxu0 %v983
    %985 = vmatprep.subr.mxu0 0.0
    %v986 = vand.u32 %v591, 4294901760
    %987 = vmatpush1.msra.mxu0 %v986
    %988 = vmatprep.subr.mxu0 0.0
    %v989 = vand.u32 %v590, 4294901760
    %990 = vmatpush1.msra.mxu0 %v989
    %991 = vmatprep.subr.mxu0 0.0
    %v992 = vand.u32 %v589, 4294901760
    %993 = vmatpush1.msra.mxu0 %v992
    %994 = vmatprep.subr.mxu0 0.0
    %v995 = vand.u32 %v588, 4294901760
    %996 = vmatpush1.msra.mxu0 %v995
    %997 = vmatprep.subr.mxu0 0.0
    %v998 = vand.u32 %v587, 4294901760
    %999 = vmatpush1.msra.mxu0 %v998
    %1000 = vmatprep.subr.mxu0 0.0
    %v1001 = vand.u32 %v586, 4294901760
    %1002 = vmatpush1.msra.mxu0 %v1001
    %1003 = vmatprep.subr.mxu0 0.0
    %1004 = vmatpush2.msra.mxu0 0.0
    %1005 = vmatprep.subr.mxu0 0.0
    %1006 = vmatpush2.msra.mxu0 0.0
    %1007 = vmatprep.subr.mxu0 0.0
    %1008 = vmatpush2.msra.mxu0 0.0
    %1009 = vmatprep.subr.mxu0 0.0
    %1010 = vmatpush2.msra.mxu0 0.0
    %1011 = vmatprep.subr.mxu0 0.0
    %1012 = vmatpush2.msra.mxu0 0.0
    %1013 = vmatprep.subr.mxu0 0.0
    %1014 = vmatpush2.msra.mxu0 0.0
    %1015 = vmatprep.subr.mxu0 0.0
    %1016 = vmatpush2.msra.mxu0 0.0
    %1017 = vmatprep.subr.mxu0 0.0
    %1018 = vmatpush2.msra.mxu0 0.0
    %1019 = vmatprep.subr.mxu0 0.0
    %1020 = vmatpush2.msra.mxu0 0.0
    %1021 = vmatprep.subr.mxu0 0.0
    %1022 = vmatpush2.msra.mxu0 0.0
    %1023 = vmatprep.subr.mxu0 0.0
    %1024 = vmatpush2.msra.mxu0 0.0
    %1025 = vmatprep.subr.mxu0 0.0
    %1026 = vmatpush2.msra.mxu0 0.0
    %1027 = vmatprep.subr.mxu0 0.0
    %1028 = vmatpush2.msra.mxu0 0.0
    %1029 = vmatprep.subr.mxu0 0.0
    %1030 = vmatpush2.msra.mxu0 0.0
    %1031 = vmatprep.subr.mxu0 0.0
    %1032 = vmatpush2.msra.mxu0 0.0
    %1033 = vmatprep.subr.mxu0 0.0
    %1034 = vmatpush2.msra.mxu0 0.0
    %1035 = vmatprep.mubr.f32.mxu0 0.0
    %v1036 = vand.u32 %v585, 4294901760
    %v1037 = vsub.f32 %v585, %v1036
    %v1038 = vand.u32 %v1037, 4294901760
    %1039 = vmatmul.mubr.f32.gmra.mxu0 %v1038
    %v1040 = vpop.f32.mrf.mxu0
    %v1041 = vadd.f32 %v952, %v1040
    %v1042 = vpop.f32.mrf.mxu0
    %1043 = vdwg.mxu0
    %1044 = vmatprep.subr.mxu0 0.0
    %v1045 = vand.u32 %v601, 4294901760
    %v1046 = vsub.f32 %v601, %v1045
    %v1047 = vand.u32 %v1046, 4294901760
    %1048 = vmatpush1.msra.mxu0 %v1047
    %1049 = vmatprep.subr.mxu0 0.0
    %v1050 = vand.u32 %v600, 4294901760
    %v1051 = vsub.f32 %v600, %v1050
    %v1052 = vand.u32 %v1051, 4294901760
    %1053 = vmatpush1.msra.mxu0 %v1052
    %1054 = vmatprep.subr.mxu0 0.0
    %v1055 = vand.u32 %v599, 4294901760
    %v1056 = vsub.f32 %v599, %v1055
    %v1057 = vand.u32 %v1056, 4294901760
    %1058 = vmatpush1.msra.mxu0 %v1057
    %1059 = vmatprep.subr.mxu0 0.0
    %v1060 = vand.u32 %v598, 4294901760
    %v1061 = vsub.f32 %v598, %v1060
    %v1062 = vand.u32 %v1061, 4294901760
    %1063 = vmatpush1.msra.mxu0 %v1062
    %1064 = vmatprep.subr.mxu0 0.0
    %v1065 = vand.u32 %v597, 4294901760
    %v1066 = vsub.f32 %v597, %v1065
    %v1067 = vand.u32 %v1066, 4294901760
    %1068 = vmatpush1.msra.mxu0 %v1067
    %1069 = vmatprep.subr.mxu0 0.0
    %v1070 = vand.u32 %v596, 4294901760
    %v1071 = vsub.f32 %v596, %v1070
    %v1072 = vand.u32 %v1071, 4294901760
    %1073 = vmatpush1.msra.mxu0 %v1072
    %1074 = vmatprep.subr.mxu0 0.0
    %v1075 = vand.u32 %v595, 4294901760
    %v1076 = vsub.f32 %v595, %v1075
    %v1077 = vand.u32 %v1076, 4294901760
    %1078 = vmatpush1.msra.mxu0 %v1077
    %1079 = vmatprep.subr.mxu0 0.0
    %v1080 = vand.u32 %v594, 4294901760
    %v1081 = vsub.f32 %v594, %v1080
    %v1082 = vand.u32 %v1081, 4294901760
    %1083 = vmatpush1.msra.mxu0 %v1082
    %1084 = vmatprep.subr.mxu0 0.0
    %v1085 = vand.u32 %v593, 4294901760
    %v1086 = vsub.f32 %v593, %v1085
    %v1087 = vand.u32 %v1086, 4294901760
    %1088 = vmatpush1.msra.mxu0 %v1087
    %1089 = vmatprep.subr.mxu0 0.0
    %v1090 = vand.u32 %v592, 4294901760
    %v1091 = vsub.f32 %v592, %v1090
    %v1092 = vand.u32 %v1091, 4294901760
    %1093 = vmatpush1.msra.mxu0 %v1092
    %1094 = vmatprep.subr.mxu0 0.0
    %v1095 = vand.u32 %v591, 4294901760
    %v1096 = vsub.f32 %v591, %v1095
    %v1097 = vand.u32 %v1096, 4294901760
    %1098 = vmatpush1.msra.mxu0 %v1097
    %1099 = vmatprep.subr.mxu0 0.0
    %v1100 = vand.u32 %v590, 4294901760
    %v1101 = vsub.f32 %v590, %v1100
    %v1102 = vand.u32 %v1101, 4294901760
    %1103 = vmatpush1.msra.mxu0 %v1102
    %1104 = vmatprep.subr.mxu0 0.0
    %v1105 = vand.u32 %v589, 4294901760
    %v1106 = vsub.f32 %v589, %v1105
    %v1107 = vand.u32 %v1106, 4294901760
    %1108 = vmatpush1.msra.mxu0 %v1107
    %1109 = vmatprep.subr.mxu0 0.0
    %v1110 = vand.u32 %v588, 4294901760
    %v1111 = vsub.f32 %v588, %v1110
    %v1112 = vand.u32 %v1111, 4294901760
    %1113 = vmatpush1.msra.mxu0 %v1112
    %1114 = vmatprep.subr.mxu0 0.0
    %v1115 = vand.u32 %v587, 4294901760
    %v1116 = vsub.f32 %v587, %v1115
    %v1117 = vand.u32 %v1116, 4294901760
    %1118 = vmatpush1.msra.mxu0 %v1117
    %1119 = vmatprep.subr.mxu0 0.0
    %v1120 = vand.u32 %v586, 4294901760
    %v1121 = vsub.f32 %v586, %v1120
    %v1122 = vand.u32 %v1121, 4294901760
    %1123 = vmatpush1.msra.mxu0 %v1122
    %1124 = vmatprep.subr.mxu0 0.0
    %1125 = vmatpush2.msra.mxu0 0.0
    %1126 = vmatprep.subr.mxu0 0.0
    %1127 = vmatpush2.msra.mxu0 0.0
    %1128 = vmatprep.subr.mxu0 0.0
    %1129 = vmatpush2.msra.mxu0 0.0
    %1130 = vmatprep.subr.mxu0 0.0
    %1131 = vmatpush2.msra.mxu0 0.0
    %1132 = vmatprep.subr.mxu0 0.0
    %1133 = vmatpush2.msra.mxu0 0.0
    %1134 = vmatprep.subr.mxu0 0.0
    %1135 = vmatpush2.msra.mxu0 0.0
    %1136 = vmatprep.subr.mxu0 0.0
    %1137 = vmatpush2.msra.mxu0 0.0
    %1138 = vmatprep.subr.mxu0 0.0
    %1139 = vmatpush2.msra.mxu0 0.0
    %1140 = vmatprep.subr.mxu0 0.0
    %1141 = vmatpush2.msra.mxu0 0.0
    %1142 = vmatprep.subr.mxu0 0.0
    %1143 = vmatpush2.msra.mxu0 0.0
    %1144 = vmatprep.subr.mxu0 0.0
    %1145 = vmatpush2.msra.mxu0 0.0
    %1146 = vmatprep.subr.mxu0 0.0
    %1147 = vmatpush2.msra.mxu0 0.0
    %1148 = vmatprep.subr.mxu0 0.0
    %1149 = vmatpush2.msra.mxu0 0.0
    %1150 = vmatprep.subr.mxu0 0.0
    %1151 = vmatpush2.msra.mxu0 0.0
    %1152 = vmatprep.subr.mxu0 0.0
    %1153 = vmatpush2.msra.mxu0 0.0
    %1154 = vmatprep.subr.mxu0 0.0
    %1155 = vmatpush2.msra.mxu0 0.0
    %1156 = vmatprep.mubr.f32.mxu0 0.0
    %v1157 = vand.u32 %v585, 4294901760
    %1158 = vmatmul.mubr.f32.gmra.mxu0 %v1157
    %v1159 = vpop.f32.mrf.mxu0
    %v1160 = vadd.f32 %v1041, %v1159
    %v1161 = vpop.f32.mrf.mxu0
    %1162 = vdwg.mxu0
    %1163 = vmatprep.subr.mxu0 0.0
    %v1164 = vand.u32 %v601, 4294901760
    %1165 = vmatpush1.msra.mxu0 %v1164
    %1166 = vmatprep.subr.mxu0 0.0
    %v1167 = vand.u32 %v600, 4294901760
    %1168 = vmatpush1.msra.mxu0 %v1167
    %1169 = vmatprep.subr.mxu0 0.0
    %v1170 = vand.u32 %v599, 4294901760
    %1171 = vmatpush1.msra.mxu0 %v1170
    %1172 = vmatprep.subr.mxu0 0.0
    %v1173 = vand.u32 %v598, 4294901760
    %1174 = vmatpush1.msra.mxu0 %v1173
    %1175 = vmatprep.subr.mxu0 0.0
    %v1176 = vand.u32 %v597, 4294901760
    %1177 = vmatpush1.msra.mxu0 %v1176
    %1178 = vmatprep.subr.mxu0 0.0
    %v1179 = vand.u32 %v596, 4294901760
    %1180 = vmatpush1.msra.mxu0 %v1179
    %1181 = vmatprep.subr.mxu0 0.0
    %v1182 = vand.u32 %v595, 4294901760
    %1183 = vmatpush1.msra.mxu0 %v1182
    %1184 = vmatprep.subr.mxu0 0.0
    %v1185 = vand.u32 %v594, 4294901760
    %1186 = vmatpush1.msra.mxu0 %v1185
    %1187 = vmatprep.subr.mxu0 0.0
    %v1188 = vand.u32 %v593, 4294901760
    %1189 = vmatpush1.msra.mxu0 %v1188
    %1190 = vmatprep.subr.mxu0 0.0
    %v1191 = vand.u32 %v592, 4294901760
    %1192 = vmatpush1.msra.mxu0 %v1191
    %1193 = vmatprep.subr.mxu0 0.0
    %v1194 = vand.u32 %v591, 4294901760
    %1195 = vmatpush1.msra.mxu0 %v1194
    %1196 = vmatprep.subr.mxu0 0.0
    %v1197 = vand.u32 %v590, 4294901760
    %1198 = vmatpush1.msra.mxu0 %v1197
    %1199 = vmatprep.subr.mxu0 0.0
    %v1200 = vand.u32 %v589, 4294901760
    %1201 = vmatpush1.msra.mxu0 %v1200
    %1202 = vmatprep.subr.mxu0 0.0
    %v1203 = vand.u32 %v588, 4294901760
    %1204 = vmatpush1.msra.mxu0 %v1203
    %1205 = vmatprep.subr.mxu0 0.0
    %v1206 = vand.u32 %v587, 4294901760
    %1207 = vmatpush1.msra.mxu0 %v1206
    %1208 = vmatprep.subr.mxu0 0.0
    %v1209 = vand.u32 %v586, 4294901760
    %1210 = vmatpush1.msra.mxu0 %v1209
    %1211 = vmatprep.subr.mxu0 0.0
    %1212 = vmatpush2.msra.mxu0 0.0
    %1213 = vmatprep.subr.mxu0 0.0
    %1214 = vmatpush2.msra.mxu0 0.0
    %1215 = vmatprep.subr.mxu0 0.0
    %1216 = vmatpush2.msra.mxu0 0.0
    %1217 = vmatprep.subr.mxu0 0.0
    %1218 = vmatpush2.msra.mxu0 0.0
    %1219 = vmatprep.subr.mxu0 0.0
    %1220 = vmatpush2.msra.mxu0 0.0
    %1221 = vmatprep.subr.mxu0 0.0
    %1222 = vmatpush2.msra.mxu0 0.0
    %1223 = vmatprep.subr.mxu0 0.0
    %1224 = vmatpush2.msra.mxu0 0.0
    %1225 = vmatprep.subr.mxu0 0.0
    %1226 = vmatpush2.msra.mxu0 0.0
    %1227 = vmatprep.subr.mxu0 0.0
    %1228 = vmatpush2.msra.mxu0 0.0
    %1229 = vmatprep.subr.mxu0 0.0
    %1230 = vmatpush2.msra.mxu0 0.0
    %1231 = vmatprep.subr.mxu0 0.0
    %1232 = vmatpush2.msra.mxu0 0.0
    %1233 = vmatprep.subr.mxu0 0.0
    %1234 = vmatpush2.msra.mxu0 0.0
    %1235 = vmatprep.subr.mxu0 0.0
    %1236 = vmatpush2.msra.mxu0 0.0
    %1237 = vmatprep.subr.mxu0 0.0
    %1238 = vmatpush2.msra.mxu0 0.0
    %1239 = vmatprep.subr.mxu0 0.0
    %1240 = vmatpush2.msra.mxu0 0.0
    %1241 = vmatprep.subr.mxu0 0.0
    %1242 = vmatpush2.msra.mxu0 0.0
    %1243 = vmatprep.mubr.f32.mxu0 0.0
    %v1244 = vand.u32 %v585, 4294901760
    %1245 = vmatmul.mubr.f32.gmra.mxu0 %v1244
    %v1246 = vpop.f32.mrf.mxu0
    %v1247 = vadd.f32 %v1160, %v1246
    %v1248 = vpop.f32.mrf.mxu0
    %1249 = vdwg.mxu0
    %v1250 = vmul.f32 %v1247, 0.5
    %v1251 = vmul.f32 %v1247, %v581
    %v1252 = verf.f32.pop %v1251
    %v1253 = vadd.f32 %v1252, 1.0
    %v1254 = vmul.f32 %v1250, %v1253
    %s1255 = scalar_lea.vmem [#allocation6], 128
    %v1256 = vld [vmem:[%s1255] sm:$0xff]
    %v1257 = vld [vmem:[%s1255 + $0x8] sm:$0xff]
    %v1258 = vld [vmem:[%s1255 + $0x10] sm:$0xff]
    %v1259 = vld [vmem:[%s1255 + $0x18] sm:$0xff]
    %v1260 = vld [vmem:[%s1255 + $0x20] sm:$0xff]
    %v1261 = vld [vmem:[%s1255 + $0x28] sm:$0xff]
    %v1262 = vld [vmem:[%s1255 + $0x30] sm:$0xff]
    %v1263 = vld [vmem:[%s1255 + $0x38] sm:$0xff]
    %v1264 = vld [vmem:[%s1255 + $0x40] sm:$0xff]
    %v1265 = vld [vmem:[%s1255 + $0x48] sm:$0xff]
    %v1266 = vld [vmem:[%s1255 + $0x50] sm:$0xff]
    %v1267 = vld [vmem:[%s1255 + $0x58] sm:$0xff]
    %v1268 = vld [vmem:[%s1255 + $0x60] sm:$0xff]
    %v1269 = vld [vmem:[%s1255 + $0x68] sm:$0xff]
    %v1270 = vld [vmem:[%s1255 + $0x70] sm:$0xff]
    %v1271 = vld [vmem:[%s1255 + $0x78] sm:$0xff]
    %s1272 = scalar_lea.vmem %s4, 1
    %v1273 = vld [vmem:[%s1272] sm:$0x1]
    %v1275 = vlaneseq
    %v1276 = vshrl.u32 %v1275, 7
    %v1277 = vsub.s32 0, %v1276
    %v1278 = vrot.slane %v1273, %v1277
    %1280 = vmatprep.subr.mxu0 0.0
    %v1281 = vand.u32 %v1271, 4294901760
    %1282 = vmatpush1.msra.mxu0 %v1281
    %1283 = vmatprep.subr.mxu0 0.0
    %v1284 = vand.u32 %v1270, 4294901760
    %1285 = vmatpush1.msra.mxu0 %v1284
    %1286 = vmatprep.subr.mxu0 0.0
    %v1287 = vand.u32 %v1269, 4294901760
    %1288 = vmatpush1.msra.mxu0 %v1287
    %1289 = vmatprep.subr.mxu0 0.0
    %v1290 = vand.u32 %v1268, 4294901760
    %1291 = vmatpush1.msra.mxu0 %v1290
    %1292 = vmatprep.subr.mxu0 0.0
    %v1293 = vand.u32 %v1267, 4294901760
    %1294 = vmatpush1.msra.mxu0 %v1293
    %1295 = vmatprep.subr.mxu0 0.0
    %v1296 = vand.u32 %v1266, 4294901760
    %1297 = vmatpush1.msra.mxu0 %v1296
    %1298 = vmatprep.subr.mxu0 0.0
    %v1299 = vand.u32 %v1265, 4294901760
    %1300 = vmatpush1.msra.mxu0 %v1299
    %1301 = vmatprep.subr.mxu0 0.0
    %v1302 = vand.u32 %v1264, 4294901760
    %1303 = vmatpush1.msra.mxu0 %v1302
    %1304 = vmatprep.subr.mxu0 0.0
    %v1305 = vand.u32 %v1263, 4294901760
    %1306 = vmatpush1.msra.mxu0 %v1305
    %1307 = vmatprep.subr.mxu0 0.0
    %v1308 = vand.u32 %v1262, 4294901760
    %1309 = vmatpush1.msra.mxu0 %v1308
    %1310 = vmatprep.subr.mxu0 0.0
    %v1311 = vand.u32 %v1261, 4294901760
    %1312 = vmatpush1.msra.mxu0 %v1311
    %1313 = vmatprep.subr.mxu0 0.0
    %v1314 = vand.u32 %v1260, 4294901760
    %1315 = vmatpush1.msra.mxu0 %v1314
    %1316 = vmatprep.subr.mxu0 0.0
    %v1317 = vand.u32 %v1259, 4294901760
    %1318 = vmatpush1.msra.mxu0 %v1317
    %1319 = vmatprep.subr.mxu0 0.0
    %v1320 = vand.u32 %v1258, 4294901760
    %1321 = vmatpush1.msra.mxu0 %v1320
    %1322 = vmatprep.subr.mxu0 0.0
    %v1323 = vand.u32 %v1257, 4294901760
    %1324 = vmatpush1.msra.mxu0 %v1323
    %1325 = vmatprep.subr.mxu0 0.0
    %v1326 = vand.u32 %v1256, 4294901760
    %1327 = vmatpush1.msra.mxu0 %v1326
    %1328 = vmatprep.subr.mxu0 0.0
    %1329 = vmatpush2.msra.mxu0 0.0
    %1330 = vmatprep.subr.mxu0 0.0
    %1331 = vmatpush2.msra.mxu0 0.0
    %1332 = vmatprep.subr.mxu0 0.0
    %1333 = vmatpush2.msra.mxu0 0.0
    %1334 = vmatprep.subr.mxu0 0.0
    %1335 = vmatpush2.msra.mxu0 0.0
    %1336 = vmatprep.subr.mxu0 0.0
    %1337 = vmatpush2.msra.mxu0 0.0
    %1338 = vmatprep.subr.mxu0 0.0
    %1339 = vmatpush2.msra.mxu0 0.0
    %1340 = vmatprep.subr.mxu0 0.0
    %1341 = vmatpush2.msra.mxu0 0.0
    %1342 = vmatprep.subr.mxu0 0.0
    %1343 = vmatpush2.msra.mxu0 0.0
    %1344 = vmatprep.subr.mxu0 0.0
    %1345 = vmatpush2.msra.mxu0 0.0
    %1346 = vmatprep.subr.mxu0 0.0
    %1347 = vmatpush2.msra.mxu0 0.0
    %1348 = vmatprep.subr.mxu0 0.0
    %1349 = vmatpush2.msra.mxu0 0.0
    %1350 = vmatprep.subr.mxu0 0.0
    %1351 = vmatpush2.msra.mxu0 0.0
    %1352 = vmatprep.subr.mxu0 0.0
    %1353 = vmatpush2.msra.mxu0 0.0
    %1354 = vmatprep.subr.mxu0 0.0
    %1355 = vmatpush2.msra.mxu0 0.0
    %1356 = vmatprep.subr.mxu0 0.0
    %1357 = vmatpush2.msra.mxu0 0.0
    %1358 = vmatprep.subr.mxu0 0.0
    %1359 = vmatpush2.msra.mxu0 0.0
    %1360 = vmatprep.mubr.f32.mxu0 0.0
    %v1361 = vand.u32 %v1254, 4294901760
    %v1362 = vsub.f32 %v1254, %v1361
    %v1363 = vand.u32 %v1362, 4294901760
    %v1364 = vsub.f32 %v1362, %v1363
    %v1365 = vand.u32 %v1364, 4294901760
    %1366 = vmatmul.mubr.f32.gmra.mxu0 %v1365
    %v1367 = vpop.f32.mrf.mxu0
    %v1368 = vadd.f32 %v1278, %v1367
    %v1369 = vpop.f32.mrf.mxu0
    %1370 = vdwg.mxu0
    %1371 = vmatprep.subr.mxu0 0.0
    %v1372 = vand.u32 %v1271, 4294901760
    %v1373 = vsub.f32 %v1271, %v1372
    %v1374 = vand.u32 %v1373, 4294901760
    %v1375 = vsub.f32 %v1373, %v1374
    %v1376 = vand.u32 %v1375, 4294901760
    %1377 = vmatpush1.msra.mxu0 %v1376
    %1378 = vmatprep.subr.mxu0 0.0
    %v1379 = vand.u32 %v1270, 4294901760
    %v1380 = vsub.f32 %v1270, %v1379
    %v1381 = vand.u32 %v1380, 4294901760
    %v1382 = vsub.f32 %v1380, %v1381
    %v1383 = vand.u32 %v1382, 4294901760
    %1384 = vmatpush1.msra.mxu0 %v1383
    %1385 = vmatprep.subr.mxu0 0.0
    %v1386 = vand.u32 %v1269, 4294901760
    %v1387 = vsub.f32 %v1269, %v1386
    %v1388 = vand.u32 %v1387, 4294901760
    %v1389 = vsub.f32 %v1387, %v1388
    %v1390 = vand.u32 %v1389, 4294901760
    %1391 = vmatpush1.msra.mxu0 %v1390
    %1392 = vmatprep.subr.mxu0 0.0
    %v1393 = vand.u32 %v1268, 4294901760
    %v1394 = vsub.f32 %v1268, %v1393
    %v1395 = vand.u32 %v1394, 4294901760
    %v1396 = vsub.f32 %v1394, %v1395
    %v1397 = vand.u32 %v1396, 4294901760
    %1398 = vmatpush1.msra.mxu0 %v1397
    %1399 = vmatprep.subr.mxu0 0.0
    %v1400 = vand.u32 %v1267, 4294901760
    %v1401 = vsub.f32 %v1267, %v1400
    %v1402 = vand.u32 %v1401, 4294901760
    %v1403 = vsub.f32 %v1401, %v1402
    %v1404 = vand.u32 %v1403, 4294901760
    %1405 = vmatpush1.msra.mxu0 %v1404
    %1406 = vmatprep.subr.mxu0 0.0
    %v1407 = vand.u32 %v1266, 4294901760
    %v1408 = vsub.f32 %v1266, %v1407
    %v1409 = vand.u32 %v1408, 4294901760
    %v1410 = vsub.f32 %v1408, %v1409
    %v1411 = vand.u32 %v1410, 4294901760
    %1412 = vmatpush1.msra.mxu0 %v1411
    %1413 = vmatprep.subr.mxu0 0.0
    %v1414 = vand.u32 %v1265, 4294901760
    %v1415 = vsub.f32 %v1265, %v1414
    %v1416 = vand.u32 %v1415, 4294901760
    %v1417 = vsub.f32 %v1415, %v1416
    %v1418 = vand.u32 %v1417, 4294901760
    %1419 = vmatpush1.msra.mxu0 %v1418
    %1420 = vmatprep.subr.mxu0 0.0
    %v1421 = vand.u32 %v1264, 4294901760
    %v1422 = vsub.f32 %v1264, %v1421
    %v1423 = vand.u32 %v1422, 4294901760
    %v1424 = vsub.f32 %v1422, %v1423
    %v1425 = vand.u32 %v1424, 4294901760
    %1426 = vmatpush1.msra.mxu0 %v1425
    %1427 = vmatprep.subr.mxu0 0.0
    %v1428 = vand.u32 %v1263, 4294901760
    %v1429 = vsub.f32 %v1263, %v1428
    %v1430 = vand.u32 %v1429, 4294901760
    %v1431 = vsub.f32 %v1429, %v1430
    %v1432 = vand.u32 %v1431, 4294901760
    %1433 = vmatpush1.msra.mxu0 %v1432
    %1434 = vmatprep.subr.mxu0 0.0
    %v1435 = vand.u32 %v1262, 4294901760
    %v1436 = vsub.f32 %v1262, %v1435
    %v1437 = vand.u32 %v1436, 4294901760
    %v1438 = vsub.f32 %v1436, %v1437
    %v1439 = vand.u32 %v1438, 4294901760
    %1440 = vmatpush1.msra.mxu0 %v1439
    %1441 = vmatprep.subr.mxu0 0.0
    %v1442 = vand.u32 %v1261, 4294901760
    %v1443 = vsub.f32 %v1261, %v1442
    %v1444 = vand.u32 %v1443, 4294901760
    %v1445 = vsub.f32 %v1443, %v1444
    %v1446 = vand.u32 %v1445, 4294901760
    %1447 = vmatpush1.msra.mxu0 %v1446
    %1448 = vmatprep.subr.mxu0 0.0
    %v1449 = vand.u32 %v1260, 4294901760
    %v1450 = vsub.f32 %v1260, %v1449
    %v1451 = vand.u32 %v1450, 4294901760
    %v1452 = vsub.f32 %v1450, %v1451
    %v1453 = vand.u32 %v1452, 4294901760
    %1454 = vmatpush1.msra.mxu0 %v1453
    %1455 = vmatprep.subr.mxu0 0.0
    %v1456 = vand.u32 %v1259, 4294901760
    %v1457 = vsub.f32 %v1259, %v1456
    %v1458 = vand.u32 %v1457, 4294901760
    %v1459 = vsub.f32 %v1457, %v1458
    %v1460 = vand.u32 %v1459, 4294901760
    %1461 = vmatpush1.msra.mxu0 %v1460
    %1462 = vmatprep.subr.mxu0 0.0
    %v1463 = vand.u32 %v1258, 4294901760
    %v1464 = vsub.f32 %v1258, %v1463
    %v1465 = vand.u32 %v1464, 4294901760
    %v1466 = vsub.f32 %v1464, %v1465
    %v1467 = vand.u32 %v1466, 4294901760
    %1468 = vmatpush1.msra.mxu0 %v1467
    %1469 = vmatprep.subr.mxu0 0.0
    %v1470 = vand.u32 %v1257, 4294901760
    %v1471 = vsub.f32 %v1257, %v1470
    %v1472 = vand.u32 %v1471, 4294901760
    %v1473 = vsub.f32 %v1471, %v1472
    %v1474 = vand.u32 %v1473, 4294901760
    %1475 = vmatpush1.msra.mxu0 %v1474
    %1476 = vmatprep.subr.mxu0 0.0
    %v1477 = vand.u32 %v1256, 4294901760
    %v1478 = vsub.f32 %v1256, %v1477
    %v1479 = vand.u32 %v1478, 4294901760
    %v1480 = vsub.f32 %v1478, %v1479
    %v1481 = vand.u32 %v1480, 4294901760
    %1482 = vmatpush1.msra.mxu0 %v1481
    %1483 = vmatprep.subr.mxu0 0.0
    %1484 = vmatpush2.msra.mxu0 0.0
    %1485 = vmatprep.subr.mxu0 0.0
    %1486 = vmatpush2.msra.mxu0 0.0
    %1487 = vmatprep.subr.mxu0 0.0
    %1488 = vmatpush2.msra.mxu0 0.0
    %1489 = vmatprep.subr.mxu0 0.0
    %1490 = vmatpush2.msra.mxu0 0.0
    %1491 = vmatprep.subr.mxu0 0.0
    %1492 = vmatpush2.msra.mxu0 0.0
    %1493 = vmatprep.subr.mxu0 0.0
    %1494 = vmatpush2.msra.mxu0 0.0
    %1495 = vmatprep.subr.mxu0 0.0
    %1496 = vmatpush2.msra.mxu0 0.0
    %1497 = vmatprep.subr.mxu0 0.0
    %1498 = vmatpush2.msra.mxu0 0.0
    %1499 = vmatprep.subr.mxu0 0.0
    %1500 = vmatpush2.msra.mxu0 0.0
    %1501 = vmatprep.subr.mxu0 0.0
    %1502 = vmatpush2.msra.mxu0 0.0
    %1503 = vmatprep.subr.mxu0 0.0
    %1504 = vmatpush2.msra.mxu0 0.0
    %1505 = vmatprep.subr.mxu0 0.0
    %1506 = vmatpush2.msra.mxu0 0.0
    %1507 = vmatprep.subr.mxu0 0.0
    %1508 = vmatpush2.msra.mxu0 0.0
    %1509 = vmatprep.subr.mxu0 0.0
    %1510 = vmatpush2.msra.mxu0 0.0
    %1511 = vmatprep.subr.mxu0 0.0
    %1512 = vmatpush2.msra.mxu0 0.0
    %1513 = vmatprep.subr.mxu0 0.0
    %1514 = vmatpush2.msra.mxu0 0.0
    %1515 = vmatprep.mubr.f32.mxu0 0.0
    %v1516 = vand.u32 %v1254, 4294901760
    %1517 = vmatmul.mubr.f32.gmra.mxu0 %v1516
    %v1518 = vpop.f32.mrf.mxu0
    %v1519 = vadd.f32 %v1368, %v1518
    %v1520 = vpop.f32.mrf.mxu0
    %1521 = vdwg.mxu0
    %1522 = vmatprep.subr.mxu0 0.0
    %v1523 = vand.u32 %v1271, 4294901760
    %v1524 = vsub.f32 %v1271, %v1523
    %1525 = vmatpush1.msra.mxu0 %v1524
    %1526 = vmatprep.subr.mxu0 0.0
    %v1527 = vand.u32 %v1270, 4294901760
    %v1528 = vsub.f32 %v1270, %v1527
    %1529 = vmatpush1.msra.mxu0 %v1528
    %1530 = vmatprep.subr.mxu0 0.0
    %v1531 = vand.u32 %v1269, 4294901760
    %v1532 = vsub.f32 %v1269, %v1531
    %1533 = vmatpush1.msra.mxu0 %v1532
    %1534 = vmatprep.subr.mxu0 0.0
    %v1535 = vand.u32 %v1268, 4294901760
    %v1536 = vsub.f32 %v1268, %v1535
    %1537 = vmatpush1.msra.mxu0 %v1536
    %1538 = vmatprep.subr.mxu0 0.0
    %v1539 = vand.u32 %v1267, 4294901760
    %v1540 = vsub.f32 %v1267, %v1539
    %1541 = vmatpush1.msra.mxu0 %v1540
    %1542 = vmatprep.subr.mxu0 0.0
    %v1543 = vand.u32 %v1266, 4294901760
    %v1544 = vsub.f32 %v1266, %v1543
    %1545 = vmatpush1.msra.mxu0 %v1544
    %1546 = vmatprep.subr.mxu0 0.0
    %v1547 = vand.u32 %v1265, 4294901760
    %v1548 = vsub.f32 %v1265, %v1547
    %1549 = vmatpush1.msra.mxu0 %v1548
    %1550 = vmatprep.subr.mxu0 0.0
    %v1551 = vand.u32 %v1264, 4294901760
    %v1552 = vsub.f32 %v1264, %v1551
    %1553 = vmatpush1.msra.mxu0 %v1552
    %1554 = vmatprep.subr.mxu0 0.0
    %v1555 = vand.u32 %v1263, 4294901760
    %v1556 = vsub.f32 %v1263, %v1555
    %1557 = vmatpush1.msra.mxu0 %v1556
    %1558 = vmatprep.subr.mxu0 0.0
    %v1559 = vand.u32 %v1262, 4294901760
    %v1560 = vsub.f32 %v1262, %v1559
    %1561 = vmatpush1.msra.mxu0 %v1560
    %1562 = vmatprep.subr.mxu0 0.0
    %v1563 = vand.u32 %v1261, 4294901760
    %v1564 = vsub.f32 %v1261, %v1563
    %1565 = vmatpush1.msra.mxu0 %v1564
    %1566 = vmatprep.subr.mxu0 0.0
    %v1567 = vand.u32 %v1260, 4294901760
    %v1568 = vsub.f32 %v1260, %v1567
    %1569 = vmatpush1.msra.mxu0 %v1568
    %1570 = vmatprep.subr.mxu0 0.0
    %v1571 = vand.u32 %v1259, 4294901760
    %v1572 = vsub.f32 %v1259, %v1571
    %1573 = vmatpush1.msra.mxu0 %v1572
    %1574 = vmatprep.subr.mxu0 0.0
    %v1575 = vand.u32 %v1258, 4294901760
    %v1576 = vsub.f32 %v1258, %v1575
    %1577 = vmatpush1.msra.mxu0 %v1576
    %1578 = vmatprep.subr.mxu0 0.0
    %v1579 = vand.u32 %v1257, 4294901760
    %v1580 = vsub.f32 %v1257, %v1579
    %1581 = vmatpush1.msra.mxu0 %v1580
    %1582 = vmatprep.subr.mxu0 0.0
    %v1583 = vand.u32 %v1256, 4294901760
    %v1584 = vsub.f32 %v1256, %v1583
    %1585 = vmatpush1.msra.mxu0 %v1584
    %1586 = vmatprep.subr.mxu0 0.0
    %1587 = vmatpush2.msra.mxu0 0.0
    %1588 = vmatprep.subr.mxu0 0.0
    %1589 = vmatpush2.msra.mxu0 0.0
    %1590 = vmatprep.subr.mxu0 0.0
    %1591 = vmatpush2.msra.mxu0 0.0
    %1592 = vmatprep.subr.mxu0 0.0
    %1593 = vmatpush2.msra.mxu0 0.0
    %1594 = vmatprep.subr.mxu0 0.0
    %1595 = vmatpush2.msra.mxu0 0.0
    %1596 = vmatprep.subr.mxu0 0.0
    %1597 = vmatpush2.msra.mxu0 0.0
    %1598 = vmatprep.subr.mxu0 0.0
    %1599 = vmatpush2.msra.mxu0 0.0
    %1600 = vmatprep.subr.mxu0 0.0
    %1601 = vmatpush2.msra.mxu0 0.0
    %1602 = vmatprep.subr.mxu0 0.0
    %1603 = vmatpush2.msra.mxu0 0.0
    %1604 = vmatprep.subr.mxu0 0.0
    %1605 = vmatpush2.msra.mxu0 0.0
    %1606 = vmatprep.subr.mxu0 0.0
    %1607 = vmatpush2.msra.mxu0 0.0
    %1608 = vmatprep.subr.mxu0 0.0
    %1609 = vmatpush2.msra.mxu0 0.0
    %1610 = vmatprep.subr.mxu0 0.0
    %1611 = vmatpush2.msra.mxu0 0.0
    %1612 = vmatprep.subr.mxu0 0.0
    %1613 = vmatpush2.msra.mxu0 0.0
    %1614 = vmatprep.subr.mxu0 0.0
    %1615 = vmatpush2.msra.mxu0 0.0
    %1616 = vmatprep.subr.mxu0 0.0
    %1617 = vmatpush2.msra.mxu0 0.0
    %1618 = vmatprep.mubr.f32.mxu0 0.0
    %v1619 = vand.u32 %v1254, 4294901760
    %v1620 = vsub.f32 %v1254, %v1619
    %1621 = vmatmul.mubr.f32.gmra.mxu0 %v1620
    %v1622 = vpop.f32.mrf.mxu0
    %v1623 = vadd.f32 %v1519, %v1622
    %v1624 = vpop.f32.mrf.mxu0
    %1625 = vdwg.mxu0
    %1626 = vmatprep.subr.mxu0 0.0
    %v1627 = vand.u32 %v1271, 4294901760
    %1628 = vmatpush1.msra.mxu0 %v1627
    %1629 = vmatprep.subr.mxu0 0.0
    %v1630 = vand.u32 %v1270, 4294901760
    %1631 = vmatpush1.msra.mxu0 %v1630
    %1632 = vmatprep.subr.mxu0 0.0
    %v1633 = vand.u32 %v1269, 4294901760
    %1634 = vmatpush1.msra.mxu0 %v1633
    %1635 = vmatprep.subr.mxu0 0.0
    %v1636 = vand.u32 %v1268, 4294901760
    %1637 = vmatpush1.msra.mxu0 %v1636
    %1638 = vmatprep.subr.mxu0 0.0
    %v1639 = vand.u32 %v1267, 4294901760
    %1640 = vmatpush1.msra.mxu0 %v1639
    %1641 = vmatprep.subr.mxu0 0.0
    %v1642 = vand.u32 %v1266, 4294901760
    %1643 = vmatpush1.msra.mxu0 %v1642
    %1644 = vmatprep.subr.mxu0 0.0
    %v1645 = vand.u32 %v1265, 4294901760
    %1646 = vmatpush1.msra.mxu0 %v1645
    %1647 = vmatprep.subr.mxu0 0.0
    %v1648 = vand.u32 %v1264, 4294901760
    %1649 = vmatpush1.msra.mxu0 %v1648
    %1650 = vmatprep.subr.mxu0 0.0
    %v1651 = vand.u32 %v1263, 4294901760
    %1652 = vmatpush1.msra.mxu0 %v1651
    %1653 = vmatprep.subr.mxu0 0.0
    %v1654 = vand.u32 %v1262, 4294901760
    %1655 = vmatpush1.msra.mxu0 %v1654
    %1656 = vmatprep.subr.mxu0 0.0
    %v1657 = vand.u32 %v1261, 4294901760
    %1658 = vmatpush1.msra.mxu0 %v1657
    %1659 = vmatprep.subr.mxu0 0.0
    %v1660 = vand.u32 %v1260, 4294901760
    %1661 = vmatpush1.msra.mxu0 %v1660
    %1662 = vmatprep.subr.mxu0 0.0
    %v1663 = vand.u32 %v1259, 4294901760
    %1664 = vmatpush1.msra.mxu0 %v1663
    %1665 = vmatprep.subr.mxu0 0.0
    %v1666 = vand.u32 %v1258, 4294901760
    %1667 = vmatpush1.msra.mxu0 %v1666
    %1668 = vmatprep.subr.mxu0 0.0
    %v1669 = vand.u32 %v1257, 4294901760
    %1670 = vmatpush1.msra.mxu0 %v1669
    %1671 = vmatprep.subr.mxu0 0.0
    %v1672 = vand.u32 %v1256, 4294901760
    %1673 = vmatpush1.msra.mxu0 %v1672
    %1674 = vmatprep.subr.mxu0 0.0
    %1675 = vmatpush2.msra.mxu0 0.0
    %1676 = vmatprep.subr.mxu0 0.0
    %1677 = vmatpush2.msra.mxu0 0.0
    %1678 = vmatprep.subr.mxu0 0.0
    %1679 = vmatpush2.msra.mxu0 0.0
    %1680 = vmatprep.subr.mxu0 0.0
    %1681 = vmatpush2.msra.mxu0 0.0
    %1682 = vmatprep.subr.mxu0 0.0
    %1683 = vmatpush2.msra.mxu0 0.0
    %1684 = vmatprep.subr.mxu0 0.0
    %1685 = vmatpush2.msra.mxu0 0.0
    %1686 = vmatprep.subr.mxu0 0.0
    %1687 = vmatpush2.msra.mxu0 0.0
    %1688 = vmatprep.subr.mxu0 0.0
    %1689 = vmatpush2.msra.mxu0 0.0
    %1690 = vmatprep.subr.mxu0 0.0
    %1691 = vmatpush2.msra.mxu0 0.0
    %1692 = vmatprep.subr.mxu0 0.0
    %1693 = vmatpush2.msra.mxu0 0.0
    %1694 = vmatprep.subr.mxu0 0.0
    %1695 = vmatpush2.msra.mxu0 0.0
    %1696 = vmatprep.subr.mxu0 0.0
    %1697 = vmatpush2.msra.mxu0 0.0
    %1698 = vmatprep.subr.mxu0 0.0
    %1699 = vmatpush2.msra.mxu0 0.0
    %1700 = vmatprep.subr.mxu0 0.0
    %1701 = vmatpush2.msra.mxu0 0.0
    %1702 = vmatprep.subr.mxu0 0.0
    %1703 = vmatpush2.msra.mxu0 0.0
    %1704 = vmatprep.subr.mxu0 0.0
    %1705 = vmatpush2.msra.mxu0 0.0
    %1706 = vmatprep.mubr.f32.mxu0 0.0
    %v1707 = vand.u32 %v1254, 4294901760
    %v1708 = vsub.f32 %v1254, %v1707
    %v1709 = vand.u32 %v1708, 4294901760
    %1710 = vmatmul.mubr.f32.gmra.mxu0 %v1709
    %v1711 = vpop.f32.mrf.mxu0
    %v1712 = vadd.f32 %v1623, %v1711
    %v1713 = vpop.f32.mrf.mxu0
    %1714 = vdwg.mxu0
    %1715 = vmatprep.subr.mxu0 0.0
    %v1716 = vand.u32 %v1271, 4294901760
    %v1717 = vsub.f32 %v1271, %v1716
    %v1718 = vand.u32 %v1717, 4294901760
    %1719 = vmatpush1.msra.mxu0 %v1718
    %1720 = vmatprep.subr.mxu0 0.0
    %v1721 = vand.u32 %v1270, 4294901760
    %v1722 = vsub.f32 %v1270, %v1721
    %v1723 = vand.u32 %v1722, 4294901760
    %1724 = vmatpush1.msra.mxu0 %v1723
    %1725 = vmatprep.subr.mxu0 0.0
    %v1726 = vand.u32 %v1269, 4294901760
    %v1727 = vsub.f32 %v1269, %v1726
    %v1728 = vand.u32 %v1727, 4294901760
    %1729 = vmatpush1.msra.mxu0 %v1728
    %1730 = vmatprep.subr.mxu0 0.0
    %v1731 = vand.u32 %v1268, 4294901760
    %v1732 = vsub.f32 %v1268, %v1731
    %v1733 = vand.u32 %v1732, 4294901760
    %1734 = vmatpush1.msra.mxu0 %v1733
    %1735 = vmatprep.subr.mxu0 0.0
    %v1736 = vand.u32 %v1267, 4294901760
    %v1737 = vsub.f32 %v1267, %v1736
    %v1738 = vand.u32 %v1737, 4294901760
    %1739 = vmatpush1.msra.mxu0 %v1738
    %1740 = vmatprep.subr.mxu0 0.0
    %v1741 = vand.u32 %v1266, 4294901760
    %v1742 = vsub.f32 %v1266, %v1741
    %v1743 = vand.u32 %v1742, 4294901760
    %1744 = vmatpush1.msra.mxu0 %v1743
    %1745 = vmatprep.subr.mxu0 0.0
    %v1746 = vand.u32 %v1265, 4294901760
    %v1747 = vsub.f32 %v1265, %v1746
    %v1748 = vand.u32 %v1747, 4294901760
    %1749 = vmatpush1.msra.mxu0 %v1748
    %1750 = vmatprep.subr.mxu0 0.0
    %v1751 = vand.u32 %v1264, 4294901760
    %v1752 = vsub.f32 %v1264, %v1751
    %v1753 = vand.u32 %v1752, 4294901760
    %1754 = vmatpush1.msra.mxu0 %v1753
    %1755 = vmatprep.subr.mxu0 0.0
    %v1756 = vand.u32 %v1263, 4294901760
    %v1757 = vsub.f32 %v1263, %v1756
    %v1758 = vand.u32 %v1757, 4294901760
    %1759 = vmatpush1.msra.mxu0 %v1758
    %1760 = vmatprep.subr.mxu0 0.0
    %v1761 = vand.u32 %v1262, 4294901760
    %v1762 = vsub.f32 %v1262, %v1761
    %v1763 = vand.u32 %v1762, 4294901760
    %1764 = vmatpush1.msra.mxu0 %v1763
    %1765 = vmatprep.subr.mxu0 0.0
    %v1766 = vand.u32 %v1261, 4294901760
    %v1767 = vsub.f32 %v1261, %v1766
    %v1768 = vand.u32 %v1767, 4294901760
    %1769 = vmatpush1.msra.mxu0 %v1768
    %1770 = vmatprep.subr.mxu0 0.0
    %v1771 = vand.u32 %v1260, 4294901760
    %v1772 = vsub.f32 %v1260, %v1771
    %v1773 = vand.u32 %v1772, 4294901760
    %1774 = vmatpush1.msra.mxu0 %v1773
    %1775 = vmatprep.subr.mxu0 0.0
    %v1776 = vand.u32 %v1259, 4294901760
    %v1777 = vsub.f32 %v1259, %v1776
    %v1778 = vand.u32 %v1777, 4294901760
    %1779 = vmatpush1.msra.mxu0 %v1778
    %1780 = vmatprep.subr.mxu0 0.0
    %v1781 = vand.u32 %v1258, 4294901760
    %v1782 = vsub.f32 %v1258, %v1781
    %v1783 = vand.u32 %v1782, 4294901760
    %1784 = vmatpush1.msra.mxu0 %v1783
    %1785 = vmatprep.subr.mxu0 0.0
    %v1786 = vand.u32 %v1257, 4294901760
    %v1787 = vsub.f32 %v1257, %v1786
    %v1788 = vand.u32 %v1787, 4294901760
    %1789 = vmatpush1.msra.mxu0 %v1788
    %1790 = vmatprep.subr.mxu0 0.0
    %v1791 = vand.u32 %v1256, 4294901760
    %v1792 = vsub.f32 %v1256, %v1791
    %v1793 = vand.u32 %v1792, 4294901760
    %1794 = vmatpush1.msra.mxu0 %v1793
    %1795 = vmatprep.subr.mxu0 0.0
    %1796 = vmatpush2.msra.mxu0 0.0
    %1797 = vmatprep.subr.mxu0 0.0
    %1798 = vmatpush2.msra.mxu0 0.0
    %1799 = vmatprep.subr.mxu0 0.0
    %1800 = vmatpush2.msra.mxu0 0.0
    %1801 = vmatprep.subr.mxu0 0.0
    %1802 = vmatpush2.msra.mxu0 0.0
    %1803 = vmatprep.subr.mxu0 0.0
    %1804 = vmatpush2.msra.mxu0 0.0
    %1805 = vmatprep.subr.mxu0 0.0
    %1806 = vmatpush2.msra.mxu0 0.0
    %1807 = vmatprep.subr.mxu0 0.0
    %1808 = vmatpush2.msra.mxu0 0.0
    %1809 = vmatprep.subr.mxu0 0.0
    %1810 = vmatpush2.msra.mxu0 0.0
    %1811 = vmatprep.subr.mxu0 0.0
    %1812 = vmatpush2.msra.mxu0 0.0
    %1813 = vmatprep.subr.mxu0 0.0
    %1814 = vmatpush2.msra.mxu0 0.0
    %1815 = vmatprep.subr.mxu0 0.0
    %1816 = vmatpush2.msra.mxu0 0.0
    %1817 = vmatprep.subr.mxu0 0.0
    %1818 = vmatpush2.msra.mxu0 0.0
    %1819 = vmatprep.subr.mxu0 0.0
    %1820 = vmatpush2.msra.mxu0 0.0
    %1821 = vmatprep.subr.mxu0 0.0
    %1822 = vmatpush2.msra.mxu0 0.0
    %1823 = vmatprep.subr.mxu0 0.0
    %1824 = vmatpush2.msra.mxu0 0.0
    %1825 = vmatprep.subr.mxu0 0.0
    %1826 = vmatpush2.msra.mxu0 0.0
    %1827 = vmatprep.mubr.f32.mxu0 0.0
    %v1828 = vand.u32 %v1254, 4294901760
    %1829 = vmatmul.mubr.f32.gmra.mxu0 %v1828
    %v1830 = vpop.f32.mrf.mxu0
    %v1831 = vadd.f32 %v1712, %v1830
    %v1832 = vpop.f32.mrf.mxu0
    %1833 = vdwg.mxu0
    %1834 = vmatprep.subr.mxu0 0.0
    %v1835 = vand.u32 %v1271, 4294901760
    %1836 = vmatpush1.msra.mxu0 %v1835
    %1837 = vmatprep.subr.mxu0 0.0
    %v1838 = vand.u32 %v1270, 4294901760
    %1839 = vmatpush1.msra.mxu0 %v1838
    %1840 = vmatprep.subr.mxu0 0.0
    %v1841 = vand.u32 %v1269, 4294901760
    %1842 = vmatpush1.msra.mxu0 %v1841
    %1843 = vmatprep.subr.mxu0 0.0
    %v1844 = vand.u32 %v1268, 4294901760
    %1845 = vmatpush1.msra.mxu0 %v1844
    %1846 = vmatprep.subr.mxu0 0.0
    %v1847 = vand.u32 %v1267, 4294901760
    %1848 = vmatpush1.msra.mxu0 %v1847
    %1849 = vmatprep.subr.mxu0 0.0
    %v1850 = vand.u32 %v1266, 4294901760
    %1851 = vmatpush1.msra.mxu0 %v1850
    %1852 = vmatprep.subr.mxu0 0.0
    %v1853 = vand.u32 %v1265, 4294901760
    %1854 = vmatpush1.msra.mxu0 %v1853
    %1855 = vmatprep.subr.mxu0 0.0
    %v1856 = vand.u32 %v1264, 4294901760
    %1857 = vmatpush1.msra.mxu0 %v1856
    %1858 = vmatprep.subr.mxu0 0.0
    %v1859 = vand.u32 %v1263, 4294901760
    %1860 = vmatpush1.msra.mxu0 %v1859
    %1861 = vmatprep.subr.mxu0 0.0
    %v1862 = vand.u32 %v1262, 4294901760
    %1863 = vmatpush1.msra.mxu0 %v1862
    %1864 = vmatprep.subr.mxu0 0.0
    %v1865 = vand.u32 %v1261, 4294901760
    %1866 = vmatpush1.msra.mxu0 %v1865
    %1867 = vmatprep.subr.mxu0 0.0
    %v1868 = vand.u32 %v1260, 4294901760
    %1869 = vmatpush1.msra.mxu0 %v1868
    %1870 = vmatprep.subr.mxu0 0.0
    %v1871 = vand.u32 %v1259, 4294901760
    %1872 = vmatpush1.msra.mxu0 %v1871
    %1873 = vmatprep.subr.mxu0 0.0
    %v1874 = vand.u32 %v1258, 4294901760
    %1875 = vmatpush1.msra.mxu0 %v1874
    %1876 = vmatprep.subr.mxu0 0.0
    %v1877 = vand.u32 %v1257, 4294901760
    %1878 = vmatpush1.msra.mxu0 %v1877
    %1879 = vmatprep.subr.mxu0 0.0
    %v1880 = vand.u32 %v1256, 4294901760
    %1881 = vmatpush1.msra.mxu0 %v1880
    %1882 = vmatprep.subr.mxu0 0.0
    %1883 = vmatpush2.msra.mxu0 0.0
    %1884 = vmatprep.subr.mxu0 0.0
    %1885 = vmatpush2.msra.mxu0 0.0
    %1886 = vmatprep.subr.mxu0 0.0
    %1887 = vmatpush2.msra.mxu0 0.0
    %1888 = vmatprep.subr.mxu0 0.0
    %1889 = vmatpush2.msra.mxu0 0.0
    %1890 = vmatprep.subr.mxu0 0.0
    %1891 = vmatpush2.msra.mxu0 0.0
    %1892 = vmatprep.subr.mxu0 0.0
    %1893 = vmatpush2.msra.mxu0 0.0
    %1894 = vmatprep.subr.mxu0 0.0
    %1895 = vmatpush2.msra.mxu0 0.0
    %1896 = vmatprep.subr.mxu0 0.0
    %1897 = vmatpush2.msra.mxu0 0.0
    %1898 = vmatprep.subr.mxu0 0.0
    %1899 = vmatpush2.msra.mxu0 0.0
    %1900 = vmatprep.subr.mxu0 0.0
    %1901 = vmatpush2.msra.mxu0 0.0
    %1902 = vmatprep.subr.mxu0 0.0
    %1903 = vmatpush2.msra.mxu0 0.0
    %1904 = vmatprep.subr.mxu0 0.0
    %1905 = vmatpush2.msra.mxu0 0.0
    %1906 = vmatprep.subr.mxu0 0.0
    %1907 = vmatpush2.msra.mxu0 0.0
    %1908 = vmatprep.subr.mxu0 0.0
    %1909 = vmatpush2.msra.mxu0 0.0
    %1910 = vmatprep.subr.mxu0 0.0
    %1911 = vmatpush2.msra.mxu0 0.0
    %1912 = vmatprep.subr.mxu0 0.0
    %1913 = vmatpush2.msra.mxu0 0.0
    %1914 = vmatprep.mubr.f32.mxu0 0.0
    %v1915 = vand.u32 %v1254, 4294901760
    %1916 = vmatmul.mubr.f32.gmra.mxu0 %v1915
    %v1917 = vpop.f32.mrf.mxu0
    %v1918 = vadd.f32 %v1831, %v1917
    %v1919 = vpop.f32.mrf.mxu0
    %1920 = vdwg.mxu0
    %v1921 = vmul.f32 %v1918, 0.5
    %v1922 = vmul.f32 %v1918, %v581
    %v1923 = verf.f32.pop %v1922
    %v1924 = vadd.f32 %v1923, 1.0
    %v1925 = vmul.f32 %v1921, %v1924
    %v1926 = vld [vmem:[#allocation7] sm:$0xff]
    %v1927 = vld [vmem:[#allocation7 + $0x8] sm:$0xff]
    %v1928 = vld [vmem:[#allocation7 + $0x10] sm:$0xff]
    %v1929 = vld [vmem:[#allocation7 + $0x18] sm:$0xff]
    %v1930 = vld [vmem:[#allocation7 + $0x20] sm:$0xff]
    %v1931 = vld [vmem:[#allocation7 + $0x28] sm:$0xff]
    %v1932 = vld [vmem:[#allocation7 + $0x30] sm:$0xff]
    %v1933 = vld [vmem:[#allocation7 + $0x38] sm:$0xff]
    %v1934 = vld [vmem:[#allocation7 + $0x40] sm:$0xff]
    %v1935 = vld [vmem:[#allocation7 + $0x48] sm:$0xff]
    %v1936 = vld [vmem:[#allocation7 + $0x50] sm:$0xff]
    %v1937 = vld [vmem:[#allocation7 + $0x58] sm:$0xff]
    %v1938 = vld [vmem:[#allocation7 + $0x60] sm:$0xff]
    %v1939 = vld [vmem:[#allocation7 + $0x68] sm:$0xff]
    %v1940 = vld [vmem:[#allocation7 + $0x70] sm:$0xff]
    %v1941 = vld [vmem:[#allocation7 + $0x78] sm:$0xff]
    %v1942 = vld [vmem:[%s6] sm:$0x1]
    %v1944 = vlaneseq
    %v1945 = vshrl.u32 %v1944, 7
    %v1946 = vsub.s32 0, %v1945
    %v1947 = vrot.slane %v1942, %v1946
    %1949 = vmatprep.subr.mxu0 0.0
    %v1950 = vand.u32 %v1941, 4294901760
    %1951 = vmatpush1.msra.mxu0 %v1950
    %1952 = vmatprep.subr.mxu0 0.0
    %v1953 = vand.u32 %v1940, 4294901760
    %1954 = vmatpush1.msra.mxu0 %v1953
    %1955 = vmatprep.subr.mxu0 0.0
    %v1956 = vand.u32 %v1939, 4294901760
    %1957 = vmatpush1.msra.mxu0 %v1956
    %1958 = vmatprep.subr.mxu0 0.0
    %v1959 = vand.u32 %v1938, 4294901760
    %1960 = vmatpush1.msra.mxu0 %v1959
    %1961 = vmatprep.subr.mxu0 0.0
    %v1962 = vand.u32 %v1937, 4294901760
    %1963 = vmatpush1.msra.mxu0 %v1962
    %1964 = vmatprep.subr.mxu0 0.0
    %v1965 = vand.u32 %v1936, 4294901760
    %1966 = vmatpush1.msra.mxu0 %v1965
    %1967 = vmatprep.subr.mxu0 0.0
    %v1968 = vand.u32 %v1935, 4294901760
    %1969 = vmatpush1.msra.mxu0 %v1968
    %1970 = vmatprep.subr.mxu0 0.0
    %v1971 = vand.u32 %v1934, 4294901760
    %1972 = vmatpush1.msra.mxu0 %v1971
    %1973 = vmatprep.subr.mxu0 0.0
    %v1974 = vand.u32 %v1933, 4294901760
    %1975 = vmatpush1.msra.mxu0 %v1974
    %1976 = vmatprep.subr.mxu0 0.0
    %v1977 = vand.u32 %v1932, 4294901760
    %1978 = vmatpush1.msra.mxu0 %v1977
    %1979 = vmatprep.subr.mxu0 0.0
    %v1980 = vand.u32 %v1931, 4294901760
    %1981 = vmatpush1.msra.mxu0 %v1980
    %1982 = vmatprep.subr.mxu0 0.0
    %v1983 = vand.u32 %v1930, 4294901760
    %1984 = vmatpush1.msra.mxu0 %v1983
    %1985 = vmatprep.subr.mxu0 0.0
    %v1986 = vand.u32 %v1929, 4294901760
    %1987 = vmatpush1.msra.mxu0 %v1986
    %1988 = vmatprep.subr.mxu0 0.0
    %v1989 = vand.u32 %v1928, 4294901760
    %1990 = vmatpush1.msra.mxu0 %v1989
    %1991 = vmatprep.subr.mxu0 0.0
    %v1992 = vand.u32 %v1927, 4294901760
    %1993 = vmatpush1.msra.mxu0 %v1992
    %1994 = vmatprep.subr.mxu0 0.0
    %v1995 = vand.u32 %v1926, 4294901760
    %1996 = vmatpush1.msra.mxu0 %v1995
    %1997 = vmatprep.subr.mxu0 0.0
    %1998 = vmatpush2.msra.mxu0 0.0
    %1999 = vmatprep.subr.mxu0 0.0
    %2000 = vmatpush2.msra.mxu0 0.0
    %2001 = vmatprep.subr.mxu0 0.0
    %2002 = vmatpush2.msra.mxu0 0.0
    %2003 = vmatprep.subr.mxu0 0.0
    %2004 = vmatpush2.msra.mxu0 0.0
    %2005 = vmatprep.subr.mxu0 0.0
    %2006 = vmatpush2.msra.mxu0 0.0
    %2007 = vmatprep.subr.mxu0 0.0
    %2008 = vmatpush2.msra.mxu0 0.0
    %2009 = vmatprep.subr.mxu0 0.0
    %2010 = vmatpush2.msra.mxu0 0.0
    %2011 = vmatprep.subr.mxu0 0.0
    %2012 = vmatpush2.msra.mxu0 0.0
    %2013 = vmatprep.subr.mxu0 0.0
    %2014 = vmatpush2.msra.mxu0 0.0
    %2015 = vmatprep.subr.mxu0 0.0
    %2016 = vmatpush2.msra.mxu0 0.0
    %2017 = vmatprep.subr.mxu0 0.0
    %2018 = vmatpush2.msra.mxu0 0.0
    %2019 = vmatprep.subr.mxu0 0.0
    %2020 = vmatpush2.msra.mxu0 0.0
    %2021 = vmatprep.subr.mxu0 0.0
    %2022 = vmatpush2.msra.mxu0 0.0
    %2023 = vmatprep.subr.mxu0 0.0
    %2024 = vmatpush2.msra.mxu0 0.0
    %2025 = vmatprep.subr.mxu0 0.0
    %2026 = vmatpush2.msra.mxu0 0.0
    %2027 = vmatprep.subr.mxu0 0.0
    %2028 = vmatpush2.msra.mxu0 0.0
    %2029 = vmatprep.mubr.f32.mxu0 0.0
    %v2030 = vand.u32 %v1925, 4294901760
    %v2031 = vsub.f32 %v1925, %v2030
    %v2032 = vand.u32 %v2031, 4294901760
    %v2033 = vsub.f32 %v2031, %v2032
    %v2034 = vand.u32 %v2033, 4294901760
    %2035 = vmatmul.mubr.f32.gmra.mxu0 %v2034
    %v2036 = vpop.f32.mrf.mxu0
    %v2037 = vadd.f32 %v1947, %v2036
    %v2038 = vpop.f32.mrf.mxu0
    %2039 = vdwg.mxu0
    %2040 = vmatprep.subr.mxu0 0.0
    %v2041 = vand.u32 %v1941, 4294901760
    %v2042 = vsub.f32 %v1941, %v2041
    %v2043 = vand.u32 %v2042, 4294901760
    %v2044 = vsub.f32 %v2042, %v2043
    %v2045 = vand.u32 %v2044, 4294901760
    %2046 = vmatpush1.msra.mxu0 %v2045
    %2047 = vmatprep.subr.mxu0 0.0
    %v2048 = vand.u32 %v1940, 4294901760
    %v2049 = vsub.f32 %v1940, %v2048
    %v2050 = vand.u32 %v2049, 4294901760
    %v2051 = vsub.f32 %v2049, %v2050
    %v2052 = vand.u32 %v2051, 4294901760
    %2053 = vmatpush1.msra.mxu0 %v2052
    %2054 = vmatprep.subr.mxu0 0.0
    %v2055 = vand.u32 %v1939, 4294901760
    %v2056 = vsub.f32 %v1939, %v2055
    %v2057 = vand.u32 %v2056, 4294901760
    %v2058 = vsub.f32 %v2056, %v2057
    %v2059 = vand.u32 %v2058, 4294901760
    %2060 = vmatpush1.msra.mxu0 %v2059
    %2061 = vmatprep.subr.mxu0 0.0
    %v2062 = vand.u32 %v1938, 4294901760
    %v2063 = vsub.f32 %v1938, %v2062
    %v2064 = vand.u32 %v2063, 4294901760
    %v2065 = vsub.f32 %v2063, %v2064
    %v2066 = vand.u32 %v2065, 4294901760
    %2067 = vmatpush1.msra.mxu0 %v2066
    %2068 = vmatprep.subr.mxu0 0.0
    %v2069 = vand.u32 %v1937, 4294901760
    %v2070 = vsub.f32 %v1937, %v2069
    %v2071 = vand.u32 %v2070, 4294901760
    %v2072 = vsub.f32 %v2070, %v2071
    %v2073 = vand.u32 %v2072, 4294901760
    %2074 = vmatpush1.msra.mxu0 %v2073
    %2075 = vmatprep.subr.mxu0 0.0
    %v2076 = vand.u32 %v1936, 4294901760
    %v2077 = vsub.f32 %v1936, %v2076
    %v2078 = vand.u32 %v2077, 4294901760
    %v2079 = vsub.f32 %v2077, %v2078
    %v2080 = vand.u32 %v2079, 4294901760
    %2081 = vmatpush1.msra.mxu0 %v2080
    %2082 = vmatprep.subr.mxu0 0.0
    %v2083 = vand.u32 %v1935, 4294901760
    %v2084 = vsub.f32 %v1935, %v2083
    %v2085 = vand.u32 %v2084, 4294901760
    %v2086 = vsub.f32 %v2084, %v2085
    %v2087 = vand.u32 %v2086, 4294901760
    %2088 = vmatpush1.msra.mxu0 %v2087
    %2089 = vmatprep.subr.mxu0 0.0
    %v2090 = vand.u32 %v1934, 4294901760
    %v2091 = vsub.f32 %v1934, %v2090
    %v2092 = vand.u32 %v2091, 4294901760
    %v2093 = vsub.f32 %v2091, %v2092
    %v2094 = vand.u32 %v2093, 4294901760
    %2095 = vmatpush1.msra.mxu0 %v2094
    %2096 = vmatprep.subr.mxu0 0.0
    %v2097 = vand.u32 %v1933, 4294901760
    %v2098 = vsub.f32 %v1933, %v2097
    %v2099 = vand.u32 %v2098, 4294901760
    %v2100 = vsub.f32 %v2098, %v2099
    %v2101 = vand.u32 %v2100, 4294901760
    %2102 = vmatpush1.msra.mxu0 %v2101
    %2103 = vmatprep.subr.mxu0 0.0
    %v2104 = vand.u32 %v1932, 4294901760
    %v2105 = vsub.f32 %v1932, %v2104
    %v2106 = vand.u32 %v2105, 4294901760
    %v2107 = vsub.f32 %v2105, %v2106
    %v2108 = vand.u32 %v2107, 4294901760
    %2109 = vmatpush1.msra.mxu0 %v2108
    %2110 = vmatprep.subr.mxu0 0.0
    %v2111 = vand.u32 %v1931, 4294901760
    %v2112 = vsub.f32 %v1931, %v2111
    %v2113 = vand.u32 %v2112, 4294901760
    %v2114 = vsub.f32 %v2112, %v2113
    %v2115 = vand.u32 %v2114, 4294901760
    %2116 = vmatpush1.msra.mxu0 %v2115
    %2117 = vmatprep.subr.mxu0 0.0
    %v2118 = vand.u32 %v1930, 4294901760
    %v2119 = vsub.f32 %v1930, %v2118
    %v2120 = vand.u32 %v2119, 4294901760
    %v2121 = vsub.f32 %v2119, %v2120
    %v2122 = vand.u32 %v2121, 4294901760
    %2123 = vmatpush1.msra.mxu0 %v2122
    %2124 = vmatprep.subr.mxu0 0.0
    %v2125 = vand.u32 %v1929, 4294901760
    %v2126 = vsub.f32 %v1929, %v2125
    %v2127 = vand.u32 %v2126, 4294901760
    %v2128 = vsub.f32 %v2126, %v2127
    %v2129 = vand.u32 %v2128, 4294901760
    %2130 = vmatpush1.msra.mxu0 %v2129
    %2131 = vmatprep.subr.mxu0 0.0
    %v2132 = vand.u32 %v1928, 4294901760
    %v2133 = vsub.f32 %v1928, %v2132
    %v2134 = vand.u32 %v2133, 4294901760
    %v2135 = vsub.f32 %v2133, %v2134
    %v2136 = vand.u32 %v2135, 4294901760
    %2137 = vmatpush1.msra.mxu0 %v2136
    %2138 = vmatprep.subr.mxu0 0.0
    %v2139 = vand.u32 %v1927, 4294901760
    %v2140 = vsub.f32 %v1927, %v2139
    %v2141 = vand.u32 %v2140, 4294901760
    %v2142 = vsub.f32 %v2140, %v2141
    %v2143 = vand.u32 %v2142, 4294901760
    %2144 = vmatpush1.msra.mxu0 %v2143
    %2145 = vmatprep.subr.mxu0 0.0
    %v2146 = vand.u32 %v1926, 4294901760
    %v2147 = vsub.f32 %v1926, %v2146
    %v2148 = vand.u32 %v2147, 4294901760
    %v2149 = vsub.f32 %v2147, %v2148
    %v2150 = vand.u32 %v2149, 4294901760
    %2151 = vmatpush1.msra.mxu0 %v2150
    %2152 = vmatprep.subr.mxu0 0.0
    %2153 = vmatpush2.msra.mxu0 0.0
    %2154 = vmatprep.subr.mxu0 0.0
    %2155 = vmatpush2.msra.mxu0 0.0
    %2156 = vmatprep.subr.mxu0 0.0
    %2157 = vmatpush2.msra.mxu0 0.0
    %2158 = vmatprep.subr.mxu0 0.0
    %2159 = vmatpush2.msra.mxu0 0.0
    %2160 = vmatprep.subr.mxu0 0.0
    %2161 = vmatpush2.msra.mxu0 0.0
    %2162 = vmatprep.subr.mxu0 0.0
    %2163 = vmatpush2.msra.mxu0 0.0
    %2164 = vmatprep.subr.mxu0 0.0
    %2165 = vmatpush2.msra.mxu0 0.0
    %2166 = vmatprep.subr.mxu0 0.0
    %2167 = vmatpush2.msra.mxu0 0.0
    %2168 = vmatprep.subr.mxu0 0.0
    %2169 = vmatpush2.msra.mxu0 0.0
    %2170 = vmatprep.subr.mxu0 0.0
    %2171 = vmatpush2.msra.mxu0 0.0
    %2172 = vmatprep.subr.mxu0 0.0
    %2173 = vmatpush2.msra.mxu0 0.0
    %2174 = vmatprep.subr.mxu0 0.0
    %2175 = vmatpush2.msra.mxu0 0.0
    %2176 = vmatprep.subr.mxu0 0.0
    %2177 = vmatpush2.msra.mxu0 0.0
    %2178 = vmatprep.subr.mxu0 0.0
    %2179 = vmatpush2.msra.mxu0 0.0
    %2180 = vmatprep.subr.mxu0 0.0
    %2181 = vmatpush2.msra.mxu0 0.0
    %2182 = vmatprep.subr.mxu0 0.0
    %2183 = vmatpush2.msra.mxu0 0.0
    %2184 = vmatprep.mubr.f32.mxu0 0.0
    %v2185 = vand.u32 %v1925, 4294901760
    %2186 = vmatmul.mubr.f32.gmra.mxu0 %v2185
    %v2187 = vpop.f32.mrf.mxu0
    %v2188 = vadd.f32 %v2037, %v2187
    %v2189 = vpop.f32.mrf.mxu0
    %2190 = vdwg.mxu0
    %2191 = vmatprep.subr.mxu0 0.0
    %v2192 = vand.u32 %v1941, 4294901760
    %v2193 = vsub.f32 %v1941, %v2192
    %2194 = vmatpush1.msra.mxu0 %v2193
    %2195 = vmatprep.subr.mxu0 0.0
    %v2196 = vand.u32 %v1940, 4294901760
    %v2197 = vsub.f32 %v1940, %v2196
    %2198 = vmatpush1.msra.mxu0 %v2197
    %2199 = vmatprep.subr.mxu0 0.0
    %v2200 = vand.u32 %v1939, 4294901760
    %v2201 = vsub.f32 %v1939, %v2200
    %2202 = vmatpush1.msra.mxu0 %v2201
    %2203 = vmatprep.subr.mxu0 0.0
    %v2204 = vand.u32 %v1938, 4294901760
    %v2205 = vsub.f32 %v1938, %v2204
    %2206 = vmatpush1.msra.mxu0 %v2205
    %2207 = vmatprep.subr.mxu0 0.0
    %v2208 = vand.u32 %v1937, 4294901760
    %v2209 = vsub.f32 %v1937, %v2208
    %2210 = vmatpush1.msra.mxu0 %v2209
    %2211 = vmatprep.subr.mxu0 0.0
    %v2212 = vand.u32 %v1936, 4294901760
    %v2213 = vsub.f32 %v1936, %v2212
    %2214 = vmatpush1.msra.mxu0 %v2213
    %2215 = vmatprep.subr.mxu0 0.0
    %v2216 = vand.u32 %v1935, 4294901760
    %v2217 = vsub.f32 %v1935, %v2216
    %2218 = vmatpush1.msra.mxu0 %v2217
    %2219 = vmatprep.subr.mxu0 0.0
    %v2220 = vand.u32 %v1934, 4294901760
    %v2221 = vsub.f32 %v1934, %v2220
    %2222 = vmatpush1.msra.mxu0 %v2221
    %2223 = vmatprep.subr.mxu0 0.0
    %v2224 = vand.u32 %v1933, 4294901760
    %v2225 = vsub.f32 %v1933, %v2224
    %2226 = vmatpush1.msra.mxu0 %v2225
    %2227 = vmatprep.subr.mxu0 0.0
    %v2228 = vand.u32 %v1932, 4294901760
    %v2229 = vsub.f32 %v1932, %v2228
    %2230 = vmatpush1.msra.mxu0 %v2229
    %2231 = vmatprep.subr.mxu0 0.0
    %v2232 = vand.u32 %v1931, 4294901760
    %v2233 = vsub.f32 %v1931, %v2232
    %2234 = vmatpush1.msra.mxu0 %v2233
    %2235 = vmatprep.subr.mxu0 0.0
    %v2236 = vand.u32 %v1930, 4294901760
    %v2237 = vsub.f32 %v1930, %v2236
    %2238 = vmatpush1.msra.mxu0 %v2237
    %2239 = vmatprep.subr.mxu0 0.0
    %v2240 = vand.u32 %v1929, 4294901760
    %v2241 = vsub.f32 %v1929, %v2240
    %2242 = vmatpush1.msra.mxu0 %v2241
    %2243 = vmatprep.subr.mxu0 0.0
    %v2244 = vand.u32 %v1928, 4294901760
    %v2245 = vsub.f32 %v1928, %v2244
    %2246 = vmatpush1.msra.mxu0 %v2245
    %2247 = vmatprep.subr.mxu0 0.0
    %v2248 = vand.u32 %v1927, 4294901760
    %v2249 = vsub.f32 %v1927, %v2248
    %2250 = vmatpush1.msra.mxu0 %v2249
    %2251 = vmatprep.subr.mxu0 0.0
    %v2252 = vand.u32 %v1926, 4294901760
    %v2253 = vsub.f32 %v1926, %v2252
    %2254 = vmatpush1.msra.mxu0 %v2253
    %2255 = vmatprep.subr.mxu0 0.0
    %2256 = vmatpush2.msra.mxu0 0.0
    %2257 = vmatprep.subr.mxu0 0.0
    %2258 = vmatpush2.msra.mxu0 0.0
    %2259 = vmatprep.subr.mxu0 0.0
    %2260 = vmatpush2.msra.mxu0 0.0
    %2261 = vmatprep.subr.mxu0 0.0
    %2262 = vmatpush2.msra.mxu0 0.0
    %2263 = vmatprep.subr.mxu0 0.0
    %2264 = vmatpush2.msra.mxu0 0.0
    %2265 = vmatprep.subr.mxu0 0.0
    %2266 = vmatpush2.msra.mxu0 0.0
    %2267 = vmatprep.subr.mxu0 0.0
    %2268 = vmatpush2.msra.mxu0 0.0
    %2269 = vmatprep.subr.mxu0 0.0
    %2270 = vmatpush2.msra.mxu0 0.0
    %2271 = vmatprep.subr.mxu0 0.0
    %2272 = vmatpush2.msra.mxu0 0.0
    %2273 = vmatprep.subr.mxu0 0.0
    %2274 = vmatpush2.msra.mxu0 0.0
    %2275 = vmatprep.subr.mxu0 0.0
    %2276 = vmatpush2.msra.mxu0 0.0
    %2277 = vmatprep.subr.mxu0 0.0
    %2278 = vmatpush2.msra.mxu0 0.0
    %2279 = vmatprep.subr.mxu0 0.0
    %2280 = vmatpush2.msra.mxu0 0.0
    %2281 = vmatprep.subr.mxu0 0.0
    %2282 = vmatpush2.msra.mxu0 0.0
    %2283 = vmatprep.subr.mxu0 0.0
    %2284 = vmatpush2.msra.mxu0 0.0
    %2285 = vmatprep.subr.mxu0 0.0
    %2286 = vmatpush2.msra.mxu0 0.0
    %2287 = vmatprep.mubr.f32.mxu0 0.0
    %v2288 = vand.u32 %v1925, 4294901760
    %v2289 = vsub.f32 %v1925, %v2288
    %2290 = vmatmul.mubr.f32.gmra.mxu0 %v2289
    %v2291 = vpop.f32.mrf.mxu0
    %v2292 = vadd.f32 %v2188, %v2291
    %v2293 = vpop.f32.mrf.mxu0
    %2294 = vdwg.mxu0
    %2295 = vmatprep.subr.mxu0 0.0
    %v2296 = vand.u32 %v1941, 4294901760
    %2297 = vmatpush1.msra.mxu0 %v2296
    %2298 = vmatprep.subr.mxu0 0.0
    %v2299 = vand.u32 %v1940, 4294901760
    %2300 = vmatpush1.msra.mxu0 %v2299
    %2301 = vmatprep.subr.mxu0 0.0
    %v2302 = vand.u32 %v1939, 4294901760
    %2303 = vmatpush1.msra.mxu0 %v2302
    %2304 = vmatprep.subr.mxu0 0.0
    %v2305 = vand.u32 %v1938, 4294901760
    %2306 = vmatpush1.msra.mxu0 %v2305
    %2307 = vmatprep.subr.mxu0 0.0
    %v2308 = vand.u32 %v1937, 4294901760
    %2309 = vmatpush1.msra.mxu0 %v2308
    %2310 = vmatprep.subr.mxu0 0.0
    %v2311 = vand.u32 %v1936, 4294901760
    %2312 = vmatpush1.msra.mxu0 %v2311
    %2313 = vmatprep.subr.mxu0 0.0
    %v2314 = vand.u32 %v1935, 4294901760
    %2315 = vmatpush1.msra.mxu0 %v2314
    %2316 = vmatprep.subr.mxu0 0.0
    %v2317 = vand.u32 %v1934, 4294901760
    %2318 = vmatpush1.msra.mxu0 %v2317
    %2319 = vmatprep.subr.mxu0 0.0
    %v2320 = vand.u32 %v1933, 4294901760
    %2321 = vmatpush1.msra.mxu0 %v2320
    %2322 = vmatprep.subr.mxu0 0.0
    %v2323 = vand.u32 %v1932, 4294901760
    %2324 = vmatpush1.msra.mxu0 %v2323
    %2325 = vmatprep.subr.mxu0 0.0
    %v2326 = vand.u32 %v1931, 4294901760
    %2327 = vmatpush1.msra.mxu0 %v2326
    %2328 = vmatprep.subr.mxu0 0.0
    %v2329 = vand.u32 %v1930, 4294901760
    %2330 = vmatpush1.msra.mxu0 %v2329
    %2331 = vmatprep.subr.mxu0 0.0
    %v2332 = vand.u32 %v1929, 4294901760
    %2333 = vmatpush1.msra.mxu0 %v2332
    %2334 = vmatprep.subr.mxu0 0.0
    %v2335 = vand.u32 %v1928, 4294901760
    %2336 = vmatpush1.msra.mxu0 %v2335
    %2337 = vmatprep.subr.mxu0 0.0
    %v2338 = vand.u32 %v1927, 4294901760
    %2339 = vmatpush1.msra.mxu0 %v2338
    %2340 = vmatprep.subr.mxu0 0.0
    %v2341 = vand.u32 %v1926, 4294901760
    %2342 = vmatpush1.msra.mxu0 %v2341
    %2343 = vmatprep.subr.mxu0 0.0
    %2344 = vmatpush2.msra.mxu0 0.0
    %2345 = vmatprep.subr.mxu0 0.0
    %2346 = vmatpush2.msra.mxu0 0.0
    %2347 = vmatprep.subr.mxu0 0.0
    %2348 = vmatpush2.msra.mxu0 0.0
    %2349 = vmatprep.subr.mxu0 0.0
    %2350 = vmatpush2.msra.mxu0 0.0
    %2351 = vmatprep.subr.mxu0 0.0
    %2352 = vmatpush2.msra.mxu0 0.0
    %2353 = vmatprep.subr.mxu0 0.0
    %2354 = vmatpush2.msra.mxu0 0.0
    %2355 = vmatprep.subr.mxu0 0.0
    %2356 = vmatpush2.msra.mxu0 0.0
    %2357 = vmatprep.subr.mxu0 0.0
    %2358 = vmatpush2.msra.mxu0 0.0
    %2359 = vmatprep.subr.mxu0 0.0
    %2360 = vmatpush2.msra.mxu0 0.0
    %2361 = vmatprep.subr.mxu0 0.0
    %2362 = vmatpush2.msra.mxu0 0.0
    %2363 = vmatprep.subr.mxu0 0.0
    %2364 = vmatpush2.msra.mxu0 0.0
    %2365 = vmatprep.subr.mxu0 0.0
    %2366 = vmatpush2.msra.mxu0 0.0
    %2367 = vmatprep.subr.mxu0 0.0
    %2368 = vmatpush2.msra.mxu0 0.0
    %2369 = vmatprep.subr.mxu0 0.0
    %2370 = vmatpush2.msra.mxu0 0.0
    %2371 = vmatprep.subr.mxu0 0.0
    %2372 = vmatpush2.msra.mxu0 0.0
    %2373 = vmatprep.subr.mxu0 0.0
    %2374 = vmatpush2.msra.mxu0 0.0
    %2375 = vmatprep.mubr.f32.mxu0 0.0
    %v2376 = vand.u32 %v1925, 4294901760
    %v2377 = vsub.f32 %v1925, %v2376
    %v2378 = vand.u32 %v2377, 4294901760
    %2379 = vmatmul.mubr.f32.gmra.mxu0 %v2378
    %v2380 = vpop.f32.mrf.mxu0
    %v2381 = vadd.f32 %v2292, %v2380
    %v2382 = vpop.f32.mrf.mxu0
    %2383 = vdwg.mxu0
    %2384 = vmatprep.subr.mxu0 0.0
    %v2385 = vand.u32 %v1941, 4294901760
    %v2386 = vsub.f32 %v1941, %v2385
    %v2387 = vand.u32 %v2386, 4294901760
    %2388 = vmatpush1.msra.mxu0 %v2387
    %2389 = vmatprep.subr.mxu0 0.0
    %v2390 = vand.u32 %v1940, 4294901760
    %v2391 = vsub.f32 %v1940, %v2390
    %v2392 = vand.u32 %v2391, 4294901760
    %2393 = vmatpush1.msra.mxu0 %v2392
    %2394 = vmatprep.subr.mxu0 0.0
    %v2395 = vand.u32 %v1939, 4294901760
    %v2396 = vsub.f32 %v1939, %v2395
    %v2397 = vand.u32 %v2396, 4294901760
    %2398 = vmatpush1.msra.mxu0 %v2397
    %2399 = vmatprep.subr.mxu0 0.0
    %v2400 = vand.u32 %v1938, 4294901760
    %v2401 = vsub.f32 %v1938, %v2400
    %v2402 = vand.u32 %v2401, 4294901760
    %2403 = vmatpush1.msra.mxu0 %v2402
    %2404 = vmatprep.subr.mxu0 0.0
    %v2405 = vand.u32 %v1937, 4294901760
    %v2406 = vsub.f32 %v1937, %v2405
    %v2407 = vand.u32 %v2406, 4294901760
    %2408 = vmatpush1.msra.mxu0 %v2407
    %2409 = vmatprep.subr.mxu0 0.0
    %v2410 = vand.u32 %v1936, 4294901760
    %v2411 = vsub.f32 %v1936, %v2410
    %v2412 = vand.u32 %v2411, 4294901760
    %2413 = vmatpush1.msra.mxu0 %v2412
    %2414 = vmatprep.subr.mxu0 0.0
    %v2415 = vand.u32 %v1935, 4294901760
    %v2416 = vsub.f32 %v1935, %v2415
    %v2417 = vand.u32 %v2416, 4294901760
    %2418 = vmatpush1.msra.mxu0 %v2417
    %2419 = vmatprep.subr.mxu0 0.0
    %v2420 = vand.u32 %v1934, 4294901760
    %v2421 = vsub.f32 %v1934, %v2420
    %v2422 = vand.u32 %v2421, 4294901760
    %2423 = vmatpush1.msra.mxu0 %v2422
    %2424 = vmatprep.subr.mxu0 0.0
    %v2425 = vand.u32 %v1933, 4294901760
    %v2426 = vsub.f32 %v1933, %v2425
    %v2427 = vand.u32 %v2426, 4294901760
    %2428 = vmatpush1.msra.mxu0 %v2427
    %2429 = vmatprep.subr.mxu0 0.0
    %v2430 = vand.u32 %v1932, 4294901760
    %v2431 = vsub.f32 %v1932, %v2430
    %v2432 = vand.u32 %v2431, 4294901760
    %2433 = vmatpush1.msra.mxu0 %v2432
    %2434 = vmatprep.subr.mxu0 0.0
    %v2435 = vand.u32 %v1931, 4294901760
    %v2436 = vsub.f32 %v1931, %v2435
    %v2437 = vand.u32 %v2436, 4294901760
    %2438 = vmatpush1.msra.mxu0 %v2437
    %2439 = vmatprep.subr.mxu0 0.0
    %v2440 = vand.u32 %v1930, 4294901760
    %v2441 = vsub.f32 %v1930, %v2440
    %v2442 = vand.u32 %v2441, 4294901760
    %2443 = vmatpush1.msra.mxu0 %v2442
    %2444 = vmatprep.subr.mxu0 0.0
    %v2445 = vand.u32 %v1929, 4294901760
    %v2446 = vsub.f32 %v1929, %v2445
    %v2447 = vand.u32 %v2446, 4294901760
    %2448 = vmatpush1.msra.mxu0 %v2447
    %2449 = vmatprep.subr.mxu0 0.0
    %v2450 = vand.u32 %v1928, 4294901760
    %v2451 = vsub.f32 %v1928, %v2450
    %v2452 = vand.u32 %v2451, 4294901760
    %2453 = vmatpush1.msra.mxu0 %v2452
    %2454 = vmatprep.subr.mxu0 0.0
    %v2455 = vand.u32 %v1927, 4294901760
    %v2456 = vsub.f32 %v1927, %v2455
    %v2457 = vand.u32 %v2456, 4294901760
    %2458 = vmatpush1.msra.mxu0 %v2457
    %2459 = vmatprep.subr.mxu0 0.0
    %v2460 = vand.u32 %v1926, 4294901760
    %v2461 = vsub.f32 %v1926, %v2460
    %v2462 = vand.u32 %v2461, 4294901760
    %2463 = vmatpush1.msra.mxu0 %v2462
    %2464 = vmatprep.subr.mxu0 0.0
    %2465 = vmatpush2.msra.mxu0 0.0
    %2466 = vmatprep.subr.mxu0 0.0
    %2467 = vmatpush2.msra.mxu0 0.0
    %2468 = vmatprep.subr.mxu0 0.0
    %2469 = vmatpush2.msra.mxu0 0.0
    %2470 = vmatprep.subr.mxu0 0.0
    %2471 = vmatpush2.msra.mxu0 0.0
    %2472 = vmatprep.subr.mxu0 0.0
    %2473 = vmatpush2.msra.mxu0 0.0
    %2474 = vmatprep.subr.mxu0 0.0
    %2475 = vmatpush2.msra.mxu0 0.0
    %2476 = vmatprep.subr.mxu0 0.0
    %2477 = vmatpush2.msra.mxu0 0.0
    %2478 = vmatprep.subr.mxu0 0.0
    %2479 = vmatpush2.msra.mxu0 0.0
    %2480 = vmatprep.subr.mxu0 0.0
    %2481 = vmatpush2.msra.mxu0 0.0
    %2482 = vmatprep.subr.mxu0 0.0
    %2483 = vmatpush2.msra.mxu0 0.0
    %2484 = vmatprep.subr.mxu0 0.0
    %2485 = vmatpush2.msra.mxu0 0.0
    %2486 = vmatprep.subr.mxu0 0.0
    %2487 = vmatpush2.msra.mxu0 0.0
    %2488 = vmatprep.subr.mxu0 0.0
    %2489 = vmatpush2.msra.mxu0 0.0
    %2490 = vmatprep.subr.mxu0 0.0
    %2491 = vmatpush2.msra.mxu0 0.0
    %2492 = vmatprep.subr.mxu0 0.0
    %2493 = vmatpush2.msra.mxu0 0.0
    %2494 = vmatprep.subr.mxu0 0.0
    %2495 = vmatpush2.msra.mxu0 0.0
    %2496 = vmatprep.mubr.f32.mxu0 0.0
    %v2497 = vand.u32 %v1925, 4294901760
    %2498 = vmatmul.mubr.f32.gmra.mxu0 %v2497
    %v2499 = vpop.f32.mrf.mxu0
    %v2500 = vadd.f32 %v2381, %v2499
    %v2501 = vpop.f32.mrf.mxu0
    %2502 = vdwg.mxu0
    %2503 = vmatprep.subr.mxu0 0.0
    %v2504 = vand.u32 %v1941, 4294901760
    %2505 = vmatpush1.msra.mxu0 %v2504
    %2506 = vmatprep.subr.mxu0 0.0
    %v2507 = vand.u32 %v1940, 4294901760
    %2508 = vmatpush1.msra.mxu0 %v2507
    %2509 = vmatprep.subr.mxu0 0.0
    %v2510 = vand.u32 %v1939, 4294901760
    %2511 = vmatpush1.msra.mxu0 %v2510
    %2512 = vmatprep.subr.mxu0 0.0
    %v2513 = vand.u32 %v1938, 4294901760
    %2514 = vmatpush1.msra.mxu0 %v2513
    %2515 = vmatprep.subr.mxu0 0.0
    %v2516 = vand.u32 %v1937, 4294901760
    %2517 = vmatpush1.msra.mxu0 %v2516
    %2518 = vmatprep.subr.mxu0 0.0
    %v2519 = vand.u32 %v1936, 4294901760
    %2520 = vmatpush1.msra.mxu0 %v2519
    %2521 = vmatprep.subr.mxu0 0.0
    %v2522 = vand.u32 %v1935, 4294901760
    %2523 = vmatpush1.msra.mxu0 %v2522
    %2524 = vmatprep.subr.mxu0 0.0
    %v2525 = vand.u32 %v1934, 4294901760
    %2526 = vmatpush1.msra.mxu0 %v2525
    %2527 = vmatprep.subr.mxu0 0.0
    %v2528 = vand.u32 %v1933, 4294901760
    %2529 = vmatpush1.msra.mxu0 %v2528
    %2530 = vmatprep.subr.mxu0 0.0
    %v2531 = vand.u32 %v1932, 4294901760
    %2532 = vmatpush1.msra.mxu0 %v2531
    %2533 = vmatprep.subr.mxu0 0.0
    %v2534 = vand.u32 %v1931, 4294901760
    %2535 = vmatpush1.msra.mxu0 %v2534
    %2536 = vmatprep.subr.mxu0 0.0
    %v2537 = vand.u32 %v1930, 4294901760
    %2538 = vmatpush1.msra.mxu0 %v2537
    %2539 = vmatprep.subr.mxu0 0.0
    %v2540 = vand.u32 %v1929, 4294901760
    %2541 = vmatpush1.msra.mxu0 %v2540
    %2542 = vmatprep.subr.mxu0 0.0
    %v2543 = vand.u32 %v1928, 4294901760
    %2544 = vmatpush1.msra.mxu0 %v2543
    %2545 = vmatprep.subr.mxu0 0.0
    %v2546 = vand.u32 %v1927, 4294901760
    %2547 = vmatpush1.msra.mxu0 %v2546
    %2548 = vmatprep.subr.mxu0 0.0
    %v2549 = vand.u32 %v1926, 4294901760
    %2550 = vmatpush1.msra.mxu0 %v2549
    %2551 = vmatprep.subr.mxu0 0.0
    %2552 = vmatpush2.msra.mxu0 0.0
    %2553 = vmatprep.subr.mxu0 0.0
    %2554 = vmatpush2.msra.mxu0 0.0
    %2555 = vmatprep.subr.mxu0 0.0
    %2556 = vmatpush2.msra.mxu0 0.0
    %2557 = vmatprep.subr.mxu0 0.0
    %2558 = vmatpush2.msra.mxu0 0.0
    %2559 = vmatprep.subr.mxu0 0.0
    %2560 = vmatpush2.msra.mxu0 0.0
    %2561 = vmatprep.subr.mxu0 0.0
    %2562 = vmatpush2.msra.mxu0 0.0
    %2563 = vmatprep.subr.mxu0 0.0
    %2564 = vmatpush2.msra.mxu0 0.0
    %2565 = vmatprep.subr.mxu0 0.0
    %2566 = vmatpush2.msra.mxu0 0.0
    %2567 = vmatprep.subr.mxu0 0.0
    %2568 = vmatpush2.msra.mxu0 0.0
    %2569 = vmatprep.subr.mxu0 0.0
    %2570 = vmatpush2.msra.mxu0 0.0
    %2571 = vmatprep.subr.mxu0 0.0
    %2572 = vmatpush2.msra.mxu0 0.0
    %2573 = vmatprep.subr.mxu0 0.0
    %2574 = vmatpush2.msra.mxu0 0.0
    %2575 = vmatprep.subr.mxu0 0.0
    %2576 = vmatpush2.msra.mxu0 0.0
    %2577 = vmatprep.subr.mxu0 0.0
    %2578 = vmatpush2.msra.mxu0 0.0
    %2579 = vmatprep.subr.mxu0 0.0
    %2580 = vmatpush2.msra.mxu0 0.0
    %2581 = vmatprep.subr.mxu0 0.0
    %2582 = vmatpush2.msra.mxu0 0.0
    %2583 = vmatprep.mubr.f32.mxu0 0.0
    %v2584 = vand.u32 %v1925, 4294901760
    %2585 = vmatmul.mubr.f32.gmra.mxu0 %v2584
    %v2586 = vpop.f32.mrf.mxu0
    %v2587 = vadd.f32 %v2500, %v2586
    %v2588 = vpop.f32.mrf.mxu0
    %2589 = vdwg.mxu0
    %vm2590 = vcmask 15360
    %2591 = vst.msk [vmem:[%s7] sm:$0xff] %vm2590, %v2587
    // Predicated region
    $region46: #{linear_classifier_forward.1} parent=1 // pred_check
      _
    $region47: #{linear_classifier_forward.1} parent=1 // pred_check_branch
      %2593 = sbr.rel (0) target = $region49
    $region48: #{linear_classifier_forward.1} parent=1 // pred_region
      _
    $region49: #{linear_classifier_forward.1} parent=1 // pred_fallthru
      _
    // Predicated region
    $region50: #{linear_classifier_forward.1} parent=1 // pred_check
      _
    $region51: #{linear_classifier_forward.1} parent=1 // pred_check_branch
      %2595 = sbr.rel (0) target = $region53
    $region52: #{linear_classifier_forward.1} parent=1 // pred_region
      _
    $region53: #{linear_classifier_forward.1} parent=1 // pred_fallthru
      _
    %2596 = vsyncpa [#allocation3], 1
    %2597 = vsyncpa [#allocation5], 1
    %2598 = vsyncpa [#allocation8], 1

</llo_original>
